<compile_context>
chip_gen: v7x
topology: tpu7x:2x2x1
jax: 0.10.0
libtpu: 0.0.40
codegen_flags: <defaults>
</compile_context>

<pallas_src>
import functools

import jax
import jax.numpy as jnp
from jax.experimental import pallas as pl
from jax.experimental.pallas import tpu as pltpu


def _round_up(x, m):
    return ((x + m - 1) // m) * m


def _sigmoid1(x):
    # Exact identity sigma(x) = 0.5*tanh(0.5*x) + 0.5  -> single EUP op (tanh).
    return 0.5 * jnp.tanh(0.5 * x) + 0.5


# ---------------------------------------------------------------------------
# Pallas kernel: hoisted input projection + unrolled recurrence + FC head.
# ---------------------------------------------------------------------------
def _lstm_encoder_kernel(x2d_ref,    # (T*Bp, F)   time-major, flattened, batch sublane-padded
                         wih_ref,    # (F, 4*Hp)   input->gates, lane-padded
                         whh_ref,    # (Hp, 4*Hp)  hidden->gates, lane-padded
                         b_ref,      # (1, 4*Hp)   b_ih + b_hh, lane-padded
                         h0_ref,     # (Bp, Hp)
                         c0_ref,     # (Bp, Hp)
                         wfc_ref,    # (Hp, Ep)    fc weight (pre-transposed, zero-padded)
                         bfc_ref,    # (1, Ep)     fc bias (zero-padded)
                         out_ref,    # (Bp, Ep)
                         *, hidden_pad, seq_len, batch_pad):
    Hp = hidden_pad
    Bp = batch_pad

    # ---- Hoisted input projection: ONE MXU matmul, bias folded in. ----
    # Kept strictly 2-D: per-step rows are static, sublane-tile-aligned slices
    # (Bp == 8), so no (T,B,4Hp) relayout copy is ever materialized.
    pre2d = (jnp.dot(x2d_ref[...], wih_ref[...],
                     preferred_element_type=jnp.float32)
             + b_ref[...])                                  # (T*Bp, 4*Hp)

    whh = whh_ref[...]
    h = h0_ref[...]
    c = c0_ref[...]

    # ---- Fully unrolled recurrence (seq_len is a static Python constant). ----
    # Only the small h @ W_hh matmul + one-EUP-per-gate activations are serial.
    for t in range(seq_len):
        pre_t = pre2d[t * Bp:(t + 1) * Bp, :]               # (Bp, 4*Hp) aligned slice
        gates = pre_t + jnp.dot(h, whh,
                                preferred_element_type=jnp.float32)
        # Lane-aligned gate slices (Hp is a multiple of 128) -> zero-cost vreg picks.
        i = _sigmoid1(gates[:, 0 * Hp:1 * Hp])
        f = _sigmoid1(gates[:, 1 * Hp:2 * Hp])
        g = jnp.tanh(gates[:, 2 * Hp:3 * Hp])
        o = _sigmoid1(gates[:, 3 * Hp:4 * Hp])
        c = f * c + i * g
        h = o * jnp.tanh(c)

    # fc: Linear(H, E) + Sigmoid on the last hidden state.  Padded rows of wfc
    # are zero, so padded hidden lanes of h contribute nothing; padded output
    # lanes / batch rows are discarded by the wrapper.
    logits = (jnp.dot(h, wfc_ref[...], preferred_element_type=jnp.float32)
              + bfc_ref[...])
    out_ref[...] = _sigmoid1(logits).astype(out_ref.dtype)


# ---------------------------------------------------------------------------
# One-time weight re-layout (call once, reuse across forward calls).
# ---------------------------------------------------------------------------
def prepare_padded_params(params, *, no_features, embedding_size):
    """Re-layout PyTorch-shaped weights into lane-padded, input-major form."""
    H = no_features * 2
    Hp = _round_up(H, 128)                  # lane-aligned gate blocks
    Ep = _round_up(embedding_size, 128)     # lane-dense fc output
    F = no_features

    wih = params["weight_ih"]                       # (4H, F)
    whh = params["weight_hh"]                       # (4H, H)
    bias = params["bias_ih"] + params["bias_hh"]    # (4H,)

    wih_p = jnp.zeros((F, 4 * Hp), jnp.float32)
    whh_p = jnp.zeros((Hp, 4 * Hp), jnp.float32)
    b_p = jnp.zeros((1, 4 * Hp), jnp.float32)
    for k in range(4):                              # gate order (i, f, g, o)
        wih_p = wih_p.at[:, k * Hp:k * Hp + H].set(wih[k * H:(k + 1) * H, :].T)
        whh_p = whh_p.at[:H, k * Hp:k * Hp + H].set(whh[k * H:(k + 1) * H, :].T)
        b_p = b_p.at[0, k * Hp:k * Hp + H].set(bias[k * H:(k + 1) * H])

    wfc_p = jnp.zeros((Hp, Ep), jnp.float32)
    wfc_p = wfc_p.at[:H, :embedding_size].set(params["fc_weight"].T)   # (Hp, Ep)
    bfc_p = jnp.zeros((1, Ep), jnp.float32)
    bfc_p = bfc_p.at[0, :embedding_size].set(params["fc_bias"])

    return {"wih": wih_p, "whh": whh_p, "b": b_p, "wfc": wfc_p, "bfc": bfc_p,
            "Hp": Hp, "Ep": Ep, "H": H}


# ---------------------------------------------------------------------------
# Forward wrapper (glue): reshape / transpose / batch padding + pallas_call.
# ---------------------------------------------------------------------------
def lstm_encoder_forward(x, padded, *, seq_len, no_features, embedding_size,
                         h0, c0):
    """x: any array reshapable to (-1, seq_len, no_features) (PyTorch .view)."""
    H, Hp, Ep = padded["H"], padded["Hp"], padded["Ep"]

    # PyTorch: x = x.view(-1, seq_len, no_features)  -> (B, T, F)
    x_btf = jnp.reshape(x, (-1, seq_len, no_features)).astype(jnp.float32)
    B = x_btf.shape[0]
    Bp = _round_up(max(B, 1), 8)            # full sublane tile

    # Time-major + batch sublane padding, flattened: the kernel does a single
    # (T*Bp, F) x (F, 4Hp) MXU matmul for the whole input projection.
    # TODO(synk): for production x sizes, express this transpose via a BlockSpec
    # index_map instead of materializing a transposed copy.
    x_tbf = jnp.transpose(x_btf, (1, 0, 2))                     # (T, B, F)
    x_tbf = jnp.pad(x_tbf, ((0, 0), (0, Bp - B), (0, 0)))       # (T, Bp, F)
    x_2d = x_tbf.reshape(seq_len * Bp, no_features)

    # Zero-padded initial state (the padded-lane invariant relies on this).
    h0_p = jnp.zeros((Bp, Hp), jnp.float32).at[:B, :H].set(h0)
    c0_p = jnp.zeros((Bp, Hp), jnp.float32).at[:B, :H].set(c0)

    kernel = functools.partial(_lstm_encoder_kernel,
                               hidden_pad=Hp, seq_len=seq_len, batch_pad=Bp)

    vmem_spec = pl.BlockSpec(memory_space=pltpu.MemorySpace.VMEM)
    out_p = pl.pallas_call(
        kernel,
        out_shape=jax.ShapeDtypeStruct((Bp, Ep), jnp.float32),
        in_specs=[vmem_spec] * 8,
        out_specs=vmem_spec,
        compiler_params=pltpu.CompilerParams(
            # tiny footprint; explicit budget keeps it portable to v7x (64 MiB)
            vmem_limit_bytes=16 * 1024 * 1024),
    )(x_2d, padded["wih"], padded["whh"], padded["b"], h0_p, c0_p,
      padded["wfc"], padded["bfc"])

    return out_p[:B, :embedding_size]


# ---------------------------------------------------------------------------
# Deterministic parameter / hidden-state initialization (synthetic weights).
# ---------------------------------------------------------------------------
def make_params(key, no_features, embedding_size):
    hidden_size = no_features * 2
    k = 1.0 / jnp.sqrt(hidden_size)          # PyTorch nn.LSTM init range
    keys = jax.random.split(key, 6)
    params = {
        "weight_ih": jax.random.uniform(keys[0], (4 * hidden_size, no_features),
                                        jnp.float32, -k, k),
        "weight_hh": jax.random.uniform(keys[1], (4 * hidden_size, hidden_size),
                                        jnp.float32, -k, k),
        "bias_ih": jax.random.uniform(keys[2], (4 * hidden_size,), jnp.float32, -k, k),
        "bias_hh": jax.random.uniform(keys[3], (4 * hidden_size,), jnp.float32, -k, k),
        # nn.Linear(hidden_size, embedding_size)
        "fc_weight": jax.random.uniform(keys[4], (embedding_size, hidden_size),
                                        jnp.float32, -k, k),
        "fc_bias": jax.random.uniform(keys[5], (embedding_size,), jnp.float32, -k, k),
    }
    return params


def init_hidden_jax(key, batch, hidden_size, num_dir=1):
    """Mirror of xavier_normal_(zeros(num_dir, B, H)) from the PyTorch module,
    made deterministic via an explicit PRNG key."""
    fan_in = batch * hidden_size
    fan_out = num_dir * hidden_size
    std = jnp.sqrt(2.0 / (fan_in + fan_out))
    h = std * jax.random.normal(key, (num_dir, batch, hidden_size), jnp.float32)
    return h[-1]                        # (B, H) — single direction / single layer


# ---------------------------------------------------------------------------
# Pure-JAX reference (unpadded) — sanity check for the padded kernel.
# ---------------------------------------------------------------------------
def reference_forward(x, params, *, seq_len, no_features, embedding_size, h0, c0):
    x_btf = jnp.reshape(x, (-1, seq_len, no_features)).astype(jnp.float32)
    wih_t = params["weight_ih"].T
    whh_t = params["weight_hh"].T
    b = params["bias_ih"] + params["bias_hh"]
    h, c = h0, c0
    for t in range(seq_len):
        gates = x_btf[:, t, :] @ wih_t + h @ whh_t + b
        i, f, g, o = jnp.split(gates, 4, axis=-1)
        c = jax.nn.sigmoid(f) * c + jax.nn.sigmoid(i) * jnp.tanh(g)
        h = jax.nn.sigmoid(o) * jnp.tanh(c)
    return jax.nn.sigmoid(h @ params["fc_weight"].T + params["fc_bias"])


# ---------------------------------------------------------------------------
if __name__ == "__main__":
    # Small shapes consistent with the module: batch=2, seq=8, features=4,
    # hidden = 2*features = 8, embedding = 32.
    B, T, F, E = 2, 8, 4, 32
    H = 2 * F

    root = jax.random.PRNGKey(0)
    k_x, k_p, k_h, k_c = jax.random.split(root, 4)

    x = jax.random.normal(k_x, (B, T, F), jnp.float32)   # reshapable input
    params = make_params(k_p, F, E)
    h0 = init_hidden_jax(k_h, B, H)
    c0 = init_hidden_jax(k_c, B, H)

    # One-time padded-weight preparation (hoisted out of the forward path).
    padded = prepare_padded_params(params, no_features=F, embedding_size=E)
    padded = jax.tree_util.tree_map(
        lambda v: jax.block_until_ready(v) if isinstance(v, jax.Array) else v, padded)

    out = lstm_encoder_forward(x, padded, seq_len=T, no_features=F,
                               embedding_size=E, h0=h0, c0=c0)
    out = jax.block_until_ready(out)

    ref = reference_forward(x, params, seq_len=T, no_features=F,
                            embedding_size=E, h0=h0, c0=c0)
    assert out.shape == (B, E)
    assert jnp.allclose(out, ref, atol=2e-5, rtol=2e-5), "mismatch vs JAX reference"

    print("KERNEL_OK")
</pallas_src>

<mosaic_0001>
module attributes {stable_mosaic.version = 11 : i64} {
  func.func @_lstm_encoder_kernel(%arg0: memref<64x4xf32, #tpu.memory_space<vmem>>, %arg1: memref<4x512xf32, #tpu.memory_space<vmem>>, %arg2: memref<128x512xf32, #tpu.memory_space<vmem>>, %arg3: memref<1x512xf32, #tpu.memory_space<vmem>>, %arg4: memref<8x128xf32, #tpu.memory_space<vmem>>, %arg5: memref<8x128xf32, #tpu.memory_space<vmem>>, %arg6: memref<128x128xf32, #tpu.memory_space<vmem>>, %arg7: memref<1x128xf32, #tpu.memory_space<vmem>>, %arg8: memref<8x128xf32, #tpu.memory_space<vmem>>) attributes {dimension_semantics = [], scalar_prefetch = 0 : i64, scratch_operands = 0 : i64, tpu.core_type = #tpu.core_type<tc>} {
    %c0 = arith.constant 0 : index
    %c0_0 = arith.constant 0 : index
    %0 = vector.load %arg0[%c0, %c0_0] : memref<64x4xf32, #tpu.memory_space<vmem>>, vector<64x4xf32>
    %c0_1 = arith.constant 0 : index
    %c0_2 = arith.constant 0 : index
    %1 = vector.load %arg1[%c0_1, %c0_2] : memref<4x512xf32, #tpu.memory_space<vmem>>, vector<4x512xf32>
    %cst = arith.constant dense<0.000000e+00> : vector<64x512xf32>
    %2 = tpu.matmul %0, %1, %cst {dimension_numbers = #tpu.dot_dimension_numbers<[1], [0], [0], [1], [0, 0, 1, 1], [], []>} : vector<64x4xf32>, vector<4x512xf32>, vector<64x512xf32> -> vector<64x512xf32>
    %c0_3 = arith.constant 0 : index
    %c0_4 = arith.constant 0 : index
    %3 = vector.load %arg3[%c0_3, %c0_4] : memref<1x512xf32, #tpu.memory_space<vmem>>, vector<1x512xf32>
    %4 = vector.broadcast %3 : vector<1x512xf32> to vector<64x512xf32>
    %5 = arith.addf %2, %4 : vector<64x512xf32>
    %c0_5 = arith.constant 0 : index
    %c0_6 = arith.constant 0 : index
    %6 = vector.load %arg2[%c0_5, %c0_6] : memref<128x512xf32, #tpu.memory_space<vmem>>, vector<128x512xf32>
    %c0_7 = arith.constant 0 : index
    %c0_8 = arith.constant 0 : index
    %7 = vector.load %arg4[%c0_7, %c0_8] : memref<8x128xf32, #tpu.memory_space<vmem>>, vector<8x128xf32>
    %c0_9 = arith.constant 0 : index
    %c0_10 = arith.constant 0 : index
    %8 = vector.load %arg5[%c0_9, %c0_10] : memref<8x128xf32, #tpu.memory_space<vmem>>, vector<8x128xf32>
    %9 = vector.extract_strided_slice %5 {offsets = [0, 0], sizes = [8, 512], strides = [1, 1]} : vector<64x512xf32> to vector<8x512xf32>
    %cst_11 = arith.constant dense<0.000000e+00> : vector<8x512xf32>
    %10 = tpu.matmul %7, %6, %cst_11 {dimension_numbers = #tpu.dot_dimension_numbers<[1], [0], [0], [1], [0, 0, 1, 1], [], []>} : vector<8x128xf32>, vector<128x512xf32>, vector<8x512xf32> -> vector<8x512xf32>
    %11 = arith.addf %9, %10 : vector<8x512xf32>
    %12 = vector.extract_strided_slice %11 {offsets = [0, 0], sizes = [8, 128], strides = [1, 1]} : vector<8x512xf32> to vector<8x128xf32>
    %cst_12 = arith.constant 5.000000e-01 : f32
    %13 = vector.broadcast %cst_12 : f32 to vector<8x128xf32>
    %14 = arith.mulf %13, %12 : vector<8x128xf32>
    %15 = math.tanh %14 : vector<8x128xf32>
    %cst_13 = arith.constant 5.000000e-01 : f32
    %16 = vector.broadcast %cst_13 : f32 to vector<8x128xf32>
    %17 = arith.mulf %16, %15 : vector<8x128xf32>
    %cst_14 = arith.constant 5.000000e-01 : f32
    %18 = vector.broadcast %cst_14 : f32 to vector<8x128xf32>
    %19 = arith.addf %17, %18 : vector<8x128xf32>
    %20 = vector.extract_strided_slice %11 {offsets = [0, 128], sizes = [8, 128], strides = [1, 1]} : vector<8x512xf32> to vector<8x128xf32>
    %cst_15 = arith.constant 5.000000e-01 : f32
    %21 = vector.broadcast %cst_15 : f32 to vector<8x128xf32>
    %22 = arith.mulf %21, %20 : vector<8x128xf32>
    %23 = math.tanh %22 : vector<8x128xf32>
    %cst_16 = arith.constant 5.000000e-01 : f32
    %24 = vector.broadcast %cst_16 : f32 to vector<8x128xf32>
    %25 = arith.mulf %24, %23 : vector<8x128xf32>
    %cst_17 = arith.constant 5.000000e-01 : f32
    %26 = vector.broadcast %cst_17 : f32 to vector<8x128xf32>
    %27 = arith.addf %25, %26 : vector<8x128xf32>
    %28 = vector.extract_strided_slice %11 {offsets = [0, 256], sizes = [8, 128], strides = [1, 1]} : vector<8x512xf32> to vector<8x128xf32>
    %29 = math.tanh %28 : vector<8x128xf32>
    %30 = vector.extract_strided_slice %11 {offsets = [0, 384], sizes = [8, 128], strides = [1, 1]} : vector<8x512xf32> to vector<8x128xf32>
    %cst_18 = arith.constant 5.000000e-01 : f32
    %31 = vector.broadcast %cst_18 : f32 to vector<8x128xf32>
    %32 = arith.mulf %31, %30 : vector<8x128xf32>
    %33 = math.tanh %32 : vector<8x128xf32>
    %cst_19 = arith.constant 5.000000e-01 : f32
    %34 = vector.broadcast %cst_19 : f32 to vector<8x128xf32>
    %35 = arith.mulf %34, %33 : vector<8x128xf32>
    %cst_20 = arith.constant 5.000000e-01 : f32
    %36 = vector.broadcast %cst_20 : f32 to vector<8x128xf32>
    %37 = arith.addf %35, %36 : vector<8x128xf32>
    %38 = arith.mulf %27, %8 : vector<8x128xf32>
    %39 = arith.mulf %19, %29 : vector<8x128xf32>
    %40 = arith.addf %38, %39 : vector<8x128xf32>
    %41 = math.tanh %40 : vector<8x128xf32>
    %42 = arith.mulf %37, %41 : vector<8x128xf32>
    %43 = vector.extract_strided_slice %5 {offsets = [8, 0], sizes = [8, 512], strides = [1, 1]} : vector<64x512xf32> to vector<8x512xf32>
    %cst_21 = arith.constant dense<0.000000e+00> : vector<8x512xf32>
    %44 = tpu.matmul %42, %6, %cst_21 {dimension_numbers = #tpu.dot_dimension_numbers<[1], [0], [0], [1], [0, 0, 1, 1], [], []>} : vector<8x128xf32>, vector<128x512xf32>, vector<8x512xf32> -> vector<8x512xf32>
    %45 = arith.addf %43, %44 : vector<8x512xf32>
    %46 = vector.extract_strided_slice %45 {offsets = [0, 0], sizes = [8, 128], strides = [1, 1]} : vector<8x512xf32> to vector<8x128xf32>
    %cst_22 = arith.constant 5.000000e-01 : f32
    %47 = vector.broadcast %cst_22 : f32 to vector<8x128xf32>
    %48 = arith.mulf %47, %46 : vector<8x128xf32>
    %49 = math.tanh %48 : vector<8x128xf32>
    %cst_23 = arith.constant 5.000000e-01 : f32
    %50 = vector.broadcast %cst_23 : f32 to vector<8x128xf32>
    %51 = arith.mulf %50, %49 : vector<8x128xf32>
    %cst_24 = arith.constant 5.000000e-01 : f32
    %52 = vector.broadcast %cst_24 : f32 to vector<8x128xf32>
    %53 = arith.addf %51, %52 : vector<8x128xf32>
    %54 = vector.extract_strided_slice %45 {offsets = [0, 128], sizes = [8, 128], strides = [1, 1]} : vector<8x512xf32> to vector<8x128xf32>
    %cst_25 = arith.constant 5.000000e-01 : f32
    %55 = vector.broadcast %cst_25 : f32 to vector<8x128xf32>
    %56 = arith.mulf %55, %54 : vector<8x128xf32>
    %57 = math.tanh %56 : vector<8x128xf32>
    %cst_26 = arith.constant 5.000000e-01 : f32
    %58 = vector.broadcast %cst_26 : f32 to vector<8x128xf32>
    %59 = arith.mulf %58, %57 : vector<8x128xf32>
    %cst_27 = arith.constant 5.000000e-01 : f32
    %60 = vector.broadcast %cst_27 : f32 to vector<8x128xf32>
    %61 = arith.addf %59, %60 : vector<8x128xf32>
    %62 = vector.extract_strided_slice %45 {offsets = [0, 256], sizes = [8, 128], strides = [1, 1]} : vector<8x512xf32> to vector<8x128xf32>
    %63 = math.tanh %62 : vector<8x128xf32>
    %64 = vector.extract_strided_slice %45 {offsets = [0, 384], sizes = [8, 128], strides = [1, 1]} : vector<8x512xf32> to vector<8x128xf32>
    %cst_28 = arith.constant 5.000000e-01 : f32
    %65 = vector.broadcast %cst_28 : f32 to vector<8x128xf32>
    %66 = arith.mulf %65, %64 : vector<8x128xf32>
    %67 = math.tanh %66 : vector<8x128xf32>
    %cst_29 = arith.constant 5.000000e-01 : f32
    %68 = vector.broadcast %cst_29 : f32 to vector<8x128xf32>
    %69 = arith.mulf %68, %67 : vector<8x128xf32>
    %cst_30 = arith.constant 5.000000e-01 : f32
    %70 = vector.broadcast %cst_30 : f32 to vector<8x128xf32>
    %71 = arith.addf %69, %70 : vector<8x128xf32>
    %72 = arith.mulf %61, %40 : vector<8x128xf32>
    %73 = arith.mulf %53, %63 : vector<8x128xf32>
    %74 = arith.addf %72, %73 : vector<8x128xf32>
    %75 = math.tanh %74 : vector<8x128xf32>
    %76 = arith.mulf %71, %75 : vector<8x128xf32>
    %77 = vector.extract_strided_slice %5 {offsets = [16, 0], sizes = [8, 512], strides = [1, 1]} : vector<64x512xf32> to vector<8x512xf32>
    %cst_31 = arith.constant dense<0.000000e+00> : vector<8x512xf32>
    %78 = tpu.matmul %76, %6, %cst_31 {dimension_numbers = #tpu.dot_dimension_numbers<[1], [0], [0], [1], [0, 0, 1, 1], [], []>} : vector<8x128xf32>, vector<128x512xf32>, vector<8x512xf32> -> vector<8x512xf32>
    %79 = arith.addf %77, %78 : vector<8x512xf32>
    %80 = vector.extract_strided_slice %79 {offsets = [0, 0], sizes = [8, 128], strides = [1, 1]} : vector<8x512xf32> to vector<8x128xf32>
    %cst_32 = arith.constant 5.000000e-01 : f32
    %81 = vector.broadcast %cst_32 : f32 to vector<8x128xf32>
    %82 = arith.mulf %81, %80 : vector<8x128xf32>
    %83 = math.tanh %82 : vector<8x128xf32>
    %cst_33 = arith.constant 5.000000e-01 : f32
    %84 = vector.broadcast %cst_33 : f32 to vector<8x128xf32>
    %85 = arith.mulf %84, %83 : vector<8x128xf32>
    %cst_34 = arith.constant 5.000000e-01 : f32
    %86 = vector.broadcast %cst_34 : f32 to vector<8x128xf32>
    %87 = arith.addf %85, %86 : vector<8x128xf32>
    %88 = vector.extract_strided_slice %79 {offsets = [0, 128], sizes = [8, 128], strides = [1, 1]} : vector<8x512xf32> to vector<8x128xf32>
    %cst_35 = arith.constant 5.000000e-01 : f32
    %89 = vector.broadcast %cst_35 : f32 to vector<8x128xf32>
    %90 = arith.mulf %89, %88 : vector<8x128xf32>
    %91 = math.tanh %90 : vector<8x128xf32>
    %cst_36 = arith.constant 5.000000e-01 : f32
    %92 = vector.broadcast %cst_36 : f32 to vector<8x128xf32>
    %93 = arith.mulf %92, %91 : vector<8x128xf32>
    %cst_37 = arith.constant 5.000000e-01 : f32
    %94 = vector.broadcast %cst_37 : f32 to vector<8x128xf32>
    %95 = arith.addf %93, %94 : vector<8x128xf32>
    %96 = vector.extract_strided_slice %79 {offsets = [0, 256], sizes = [8, 128], strides = [1, 1]} : vector<8x512xf32> to vector<8x128xf32>
    %97 = math.tanh %96 : vector<8x128xf32>
    %98 = vector.extract_strided_slice %79 {offsets = [0, 384], sizes = [8, 128], strides = [1, 1]} : vector<8x512xf32> to vector<8x128xf32>
    %cst_38 = arith.constant 5.000000e-01 : f32
    %99 = vector.broadcast %cst_38 : f32 to vector<8x128xf32>
    %100 = arith.mulf %99, %98 : vector<8x128xf32>
    %101 = math.tanh %100 : vector<8x128xf32>
    %cst_39 = arith.constant 5.000000e-01 : f32
    %102 = vector.broadcast %cst_39 : f32 to vector<8x128xf32>
    %103 = arith.mulf %102, %101 : vector<8x128xf32>
    %cst_40 = arith.constant 5.000000e-01 : f32
    %104 = vector.broadcast %cst_40 : f32 to vector<8x128xf32>
    %105 = arith.addf %103, %104 : vector<8x128xf32>
    %106 = arith.mulf %95, %74 : vector<8x128xf32>
    %107 = arith.mulf %87, %97 : vector<8x128xf32>
    %108 = arith.addf %106, %107 : vector<8x128xf32>
    %109 = math.tanh %108 : vector<8x128xf32>
    %110 = arith.mulf %105, %109 : vector<8x128xf32>
    %111 = vector.extract_strided_slice %5 {offsets = [24, 0], sizes = [8, 512], strides = [1, 1]} : vector<64x512xf32> to vector<8x512xf32>
    %cst_41 = arith.constant dense<0.000000e+00> : vector<8x512xf32>
    %112 = tpu.matmul %110, %6, %cst_41 {dimension_numbers = #tpu.dot_dimension_numbers<[1], [0], [0], [1], [0, 0, 1, 1], [], []>} : vector<8x128xf32>, vector<128x512xf32>, vector<8x512xf32> -> vector<8x512xf32>
    %113 = arith.addf %111, %112 : vector<8x512xf32>
    %114 = vector.extract_strided_slice %113 {offsets = [0, 0], sizes = [8, 128], strides = [1, 1]} : vector<8x512xf32> to vector<8x128xf32>
    %cst_42 = arith.constant 5.000000e-01 : f32
    %115 = vector.broadcast %cst_42 : f32 to vector<8x128xf32>
    %116 = arith.mulf %115, %114 : vector<8x128xf32>
    %117 = math.tanh %116 : vector<8x128xf32>
    %cst_43 = arith.constant 5.000000e-01 : f32
    %118 = vector.broadcast %cst_43 : f32 to vector<8x128xf32>
    %119 = arith.mulf %118, %117 : vector<8x128xf32>
    %cst_44 = arith.constant 5.000000e-01 : f32
    %120 = vector.broadcast %cst_44 : f32 to vector<8x128xf32>
    %121 = arith.addf %119, %120 : vector<8x128xf32>
    %122 = vector.extract_strided_slice %113 {offsets = [0, 128], sizes = [8, 128], strides = [1, 1]} : vector<8x512xf32> to vector<8x128xf32>
    %cst_45 = arith.constant 5.000000e-01 : f32
    %123 = vector.broadcast %cst_45 : f32 to vector<8x128xf32>
    %124 = arith.mulf %123, %122 : vector<8x128xf32>
    %125 = math.tanh %124 : vector<8x128xf32>
    %cst_46 = arith.constant 5.000000e-01 : f32
    %126 = vector.broadcast %cst_46 : f32 to vector<8x128xf32>
    %127 = arith.mulf %126, %125 : vector<8x128xf32>
    %cst_47 = arith.constant 5.000000e-01 : f32
    %128 = vector.broadcast %cst_47 : f32 to vector<8x128xf32>
    %129 = arith.addf %127, %128 : vector<8x128xf32>
    %130 = vector.extract_strided_slice %113 {offsets = [0, 256], sizes = [8, 128], strides = [1, 1]} : vector<8x512xf32> to vector<8x128xf32>
    %131 = math.tanh %130 : vector<8x128xf32>
    %132 = vector.extract_strided_slice %113 {offsets = [0, 384], sizes = [8, 128], strides = [1, 1]} : vector<8x512xf32> to vector<8x128xf32>
    %cst_48 = arith.constant 5.000000e-01 : f32
    %133 = vector.broadcast %cst_48 : f32 to vector<8x128xf32>
    %134 = arith.mulf %133, %132 : vector<8x128xf32>
    %135 = math.tanh %134 : vector<8x128xf32>
    %cst_49 = arith.constant 5.000000e-01 : f32
    %136 = vector.broadcast %cst_49 : f32 to vector<8x128xf32>
    %137 = arith.mulf %136, %135 : vector<8x128xf32>
    %cst_50 = arith.constant 5.000000e-01 : f32
    %138 = vector.broadcast %cst_50 : f32 to vector<8x128xf32>
    %139 = arith.addf %137, %138 : vector<8x128xf32>
    %140 = arith.mulf %129, %108 : vector<8x128xf32>
    %141 = arith.mulf %121, %131 : vector<8x128xf32>
    %142 = arith.addf %140, %141 : vector<8x128xf32>
    %143 = math.tanh %142 : vector<8x128xf32>
    %144 = arith.mulf %139, %143 : vector<8x128xf32>
    %145 = vector.extract_strided_slice %5 {offsets = [32, 0], sizes = [8, 512], strides = [1, 1]} : vector<64x512xf32> to vector<8x512xf32>
    %cst_51 = arith.constant dense<0.000000e+00> : vector<8x512xf32>
    %146 = tpu.matmul %144, %6, %cst_51 {dimension_numbers = #tpu.dot_dimension_numbers<[1], [0], [0], [1], [0, 0, 1, 1], [], []>} : vector<8x128xf32>, vector<128x512xf32>, vector<8x512xf32> -> vector<8x512xf32>
    %147 = arith.addf %145, %146 : vector<8x512xf32>
    %148 = vector.extract_strided_slice %147 {offsets = [0, 0], sizes = [8, 128], strides = [1, 1]} : vector<8x512xf32> to vector<8x128xf32>
    %cst_52 = arith.constant 5.000000e-01 : f32
    %149 = vector.broadcast %cst_52 : f32 to vector<8x128xf32>
    %150 = arith.mulf %149, %148 : vector<8x128xf32>
    %151 = math.tanh %150 : vector<8x128xf32>
    %cst_53 = arith.constant 5.000000e-01 : f32
    %152 = vector.broadcast %cst_53 : f32 to vector<8x128xf32>
    %153 = arith.mulf %152, %151 : vector<8x128xf32>
    %cst_54 = arith.constant 5.000000e-01 : f32
    %154 = vector.broadcast %cst_54 : f32 to vector<8x128xf32>
    %155 = arith.addf %153, %154 : vector<8x128xf32>
    %156 = vector.extract_strided_slice %147 {offsets = [0, 128], sizes = [8, 128], strides = [1, 1]} : vector<8x512xf32> to vector<8x128xf32>
    %cst_55 = arith.constant 5.000000e-01 : f32
    %157 = vector.broadcast %cst_55 : f32 to vector<8x128xf32>
    %158 = arith.mulf %157, %156 : vector<8x128xf32>
    %159 = math.tanh %158 : vector<8x128xf32>
    %cst_56 = arith.constant 5.000000e-01 : f32
    %160 = vector.broadcast %cst_56 : f32 to vector<8x128xf32>
    %161 = arith.mulf %160, %159 : vector<8x128xf32>
    %cst_57 = arith.constant 5.000000e-01 : f32
    %162 = vector.broadcast %cst_57 : f32 to vector<8x128xf32>
    %163 = arith.addf %161, %162 : vector<8x128xf32>
    %164 = vector.extract_strided_slice %147 {offsets = [0, 256], sizes = [8, 128], strides = [1, 1]} : vector<8x512xf32> to vector<8x128xf32>
    %165 = math.tanh %164 : vector<8x128xf32>
    %166 = vector.extract_strided_slice %147 {offsets = [0, 384], sizes = [8, 128], strides = [1, 1]} : vector<8x512xf32> to vector<8x128xf32>
    %cst_58 = arith.constant 5.000000e-01 : f32
    %167 = vector.broadcast %cst_58 : f32 to vector<8x128xf32>
    %168 = arith.mulf %167, %166 : vector<8x128xf32>
    %169 = math.tanh %168 : vector<8x128xf32>
    %cst_59 = arith.constant 5.000000e-01 : f32
    %170 = vector.broadcast %cst_59 : f32 to vector<8x128xf32>
    %171 = arith.mulf %170, %169 : vector<8x128xf32>
    %cst_60 = arith.constant 5.000000e-01 : f32
    %172 = vector.broadcast %cst_60 : f32 to vector<8x128xf32>
    %173 = arith.addf %171, %172 : vector<8x128xf32>
    %174 = arith.mulf %163, %142 : vector<8x128xf32>
    %175 = arith.mulf %155, %165 : vector<8x128xf32>
    %176 = arith.addf %174, %175 : vector<8x128xf32>
    %177 = math.tanh %176 : vector<8x128xf32>
    %178 = arith.mulf %173, %177 : vector<8x128xf32>
    %179 = vector.extract_strided_slice %5 {offsets = [40, 0], sizes = [8, 512], strides = [1, 1]} : vector<64x512xf32> to vector<8x512xf32>
    %cst_61 = arith.constant dense<0.000000e+00> : vector<8x512xf32>
    %180 = tpu.matmul %178, %6, %cst_61 {dimension_numbers = #tpu.dot_dimension_numbers<[1], [0], [0], [1], [0, 0, 1, 1], [], []>} : vector<8x128xf32>, vector<128x512xf32>, vector<8x512xf32> -> vector<8x512xf32>
    %181 = arith.addf %179, %180 : vector<8x512xf32>
    %182 = vector.extract_strided_slice %181 {offsets = [0, 0], sizes = [8, 128], strides = [1, 1]} : vector<8x512xf32> to vector<8x128xf32>
    %cst_62 = arith.constant 5.000000e-01 : f32
    %183 = vector.broadcast %cst_62 : f32 to vector<8x128xf32>
    %184 = arith.mulf %183, %182 : vector<8x128xf32>
    %185 = math.tanh %184 : vector<8x128xf32>
    %cst_63 = arith.constant 5.000000e-01 : f32
    %186 = vector.broadcast %cst_63 : f32 to vector<8x128xf32>
    %187 = arith.mulf %186, %185 : vector<8x128xf32>
    %cst_64 = arith.constant 5.000000e-01 : f32
    %188 = vector.broadcast %cst_64 : f32 to vector<8x128xf32>
    %189 = arith.addf %187, %188 : vector<8x128xf32>
    %190 = vector.extract_strided_slice %181 {offsets = [0, 128], sizes = [8, 128], strides = [1, 1]} : vector<8x512xf32> to vector<8x128xf32>
    %cst_65 = arith.constant 5.000000e-01 : f32
    %191 = vector.broadcast %cst_65 : f32 to vector<8x128xf32>
    %192 = arith.mulf %191, %190 : vector<8x128xf32>
    %193 = math.tanh %192 : vector<8x128xf32>
    %cst_66 = arith.constant 5.000000e-01 : f32
    %194 = vector.broadcast %cst_66 : f32 to vector<8x128xf32>
    %195 = arith.mulf %194, %193 : vector<8x128xf32>
    %cst_67 = arith.constant 5.000000e-01 : f32
    %196 = vector.broadcast %cst_67 : f32 to vector<8x128xf32>
    %197 = arith.addf %195, %196 : vector<8x128xf32>
    %198 = vector.extract_strided_slice %181 {offsets = [0, 256], sizes = [8, 128], strides = [1, 1]} : vector<8x512xf32> to vector<8x128xf32>
    %199 = math.tanh %198 : vector<8x128xf32>
    %200 = vector.extract_strided_slice %181 {offsets = [0, 384], sizes = [8, 128], strides = [1, 1]} : vector<8x512xf32> to vector<8x128xf32>
    %cst_68 = arith.constant 5.000000e-01 : f32
    %201 = vector.broadcast %cst_68 : f32 to vector<8x128xf32>
    %202 = arith.mulf %201, %200 : vector<8x128xf32>
    %203 = math.tanh %202 : vector<8x128xf32>
    %cst_69 = arith.constant 5.000000e-01 : f32
    %204 = vector.broadcast %cst_69 : f32 to vector<8x128xf32>
    %205 = arith.mulf %204, %203 : vector<8x128xf32>
    %cst_70 = arith.constant 5.000000e-01 : f32
    %206 = vector.broadcast %cst_70 : f32 to vector<8x128xf32>
    %207 = arith.addf %205, %206 : vector<8x128xf32>
    %208 = arith.mulf %197, %176 : vector<8x128xf32>
    %209 = arith.mulf %189, %199 : vector<8x128xf32>
    %210 = arith.addf %208, %209 : vector<8x128xf32>
    %211 = math.tanh %210 : vector<8x128xf32>
    %212 = arith.mulf %207, %211 : vector<8x128xf32>
    %213 = vector.extract_strided_slice %5 {offsets = [48, 0], sizes = [8, 512], strides = [1, 1]} : vector<64x512xf32> to vector<8x512xf32>
    %cst_71 = arith.constant dense<0.000000e+00> : vector<8x512xf32>
    %214 = tpu.matmul %212, %6, %cst_71 {dimension_numbers = #tpu.dot_dimension_numbers<[1], [0], [0], [1], [0, 0, 1, 1], [], []>} : vector<8x128xf32>, vector<128x512xf32>, vector<8x512xf32> -> vector<8x512xf32>
    %215 = arith.addf %213, %214 : vector<8x512xf32>
    %216 = vector.extract_strided_slice %215 {offsets = [0, 0], sizes = [8, 128], strides = [1, 1]} : vector<8x512xf32> to vector<8x128xf32>
    %cst_72 = arith.constant 5.000000e-01 : f32
    %217 = vector.broadcast %cst_72 : f32 to vector<8x128xf32>
    %218 = arith.mulf %217, %216 : vector<8x128xf32>
    %219 = math.tanh %218 : vector<8x128xf32>
    %cst_73 = arith.constant 5.000000e-01 : f32
    %220 = vector.broadcast %cst_73 : f32 to vector<8x128xf32>
    %221 = arith.mulf %220, %219 : vector<8x128xf32>
    %cst_74 = arith.constant 5.000000e-01 : f32
    %222 = vector.broadcast %cst_74 : f32 to vector<8x128xf32>
    %223 = arith.addf %221, %222 : vector<8x128xf32>
    %224 = vector.extract_strided_slice %215 {offsets = [0, 128], sizes = [8, 128], strides = [1, 1]} : vector<8x512xf32> to vector<8x128xf32>
    %cst_75 = arith.constant 5.000000e-01 : f32
    %225 = vector.broadcast %cst_75 : f32 to vector<8x128xf32>
    %226 = arith.mulf %225, %224 : vector<8x128xf32>
    %227 = math.tanh %226 : vector<8x128xf32>
    %cst_76 = arith.constant 5.000000e-01 : f32
    %228 = vector.broadcast %cst_76 : f32 to vector<8x128xf32>
    %229 = arith.mulf %228, %227 : vector<8x128xf32>
    %cst_77 = arith.constant 5.000000e-01 : f32
    %230 = vector.broadcast %cst_77 : f32 to vector<8x128xf32>
    %231 = arith.addf %229, %230 : vector<8x128xf32>
    %232 = vector.extract_strided_slice %215 {offsets = [0, 256], sizes = [8, 128], strides = [1, 1]} : vector<8x512xf32> to vector<8x128xf32>
    %233 = math.tanh %232 : vector<8x128xf32>
    %234 = vector.extract_strided_slice %215 {offsets = [0, 384], sizes = [8, 128], strides = [1, 1]} : vector<8x512xf32> to vector<8x128xf32>
    %cst_78 = arith.constant 5.000000e-01 : f32
    %235 = vector.broadcast %cst_78 : f32 to vector<8x128xf32>
    %236 = arith.mulf %235, %234 : vector<8x128xf32>
    %237 = math.tanh %236 : vector<8x128xf32>
    %cst_79 = arith.constant 5.000000e-01 : f32
    %238 = vector.broadcast %cst_79 : f32 to vector<8x128xf32>
    %239 = arith.mulf %238, %237 : vector<8x128xf32>
    %cst_80 = arith.constant 5.000000e-01 : f32
    %240 = vector.broadcast %cst_80 : f32 to vector<8x128xf32>
    %241 = arith.addf %239, %240 : vector<8x128xf32>
    %242 = arith.mulf %231, %210 : vector<8x128xf32>
    %243 = arith.mulf %223, %233 : vector<8x128xf32>
    %244 = arith.addf %242, %243 : vector<8x128xf32>
    %245 = math.tanh %244 : vector<8x128xf32>
    %246 = arith.mulf %241, %245 : vector<8x128xf32>
    %247 = vector.extract_strided_slice %5 {offsets = [56, 0], sizes = [8, 512], strides = [1, 1]} : vector<64x512xf32> to vector<8x512xf32>
    %cst_81 = arith.constant dense<0.000000e+00> : vector<8x512xf32>
    %248 = tpu.matmul %246, %6, %cst_81 {dimension_numbers = #tpu.dot_dimension_numbers<[1], [0], [0], [1], [0, 0, 1, 1], [], []>} : vector<8x128xf32>, vector<128x512xf32>, vector<8x512xf32> -> vector<8x512xf32>
    %249 = arith.addf %247, %248 : vector<8x512xf32>
    %250 = vector.extract_strided_slice %249 {offsets = [0, 0], sizes = [8, 128], strides = [1, 1]} : vector<8x512xf32> to vector<8x128xf32>
    %cst_82 = arith.constant 5.000000e-01 : f32
    %251 = vector.broadcast %cst_82 : f32 to vector<8x128xf32>
    %252 = arith.mulf %251, %250 : vector<8x128xf32>
    %253 = math.tanh %252 : vector<8x128xf32>
    %cst_83 = arith.constant 5.000000e-01 : f32
    %254 = vector.broadcast %cst_83 : f32 to vector<8x128xf32>
    %255 = arith.mulf %254, %253 : vector<8x128xf32>
    %cst_84 = arith.constant 5.000000e-01 : f32
    %256 = vector.broadcast %cst_84 : f32 to vector<8x128xf32>
    %257 = arith.addf %255, %256 : vector<8x128xf32>
    %258 = vector.extract_strided_slice %249 {offsets = [0, 128], sizes = [8, 128], strides = [1, 1]} : vector<8x512xf32> to vector<8x128xf32>
    %cst_85 = arith.constant 5.000000e-01 : f32
    %259 = vector.broadcast %cst_85 : f32 to vector<8x128xf32>
    %260 = arith.mulf %259, %258 : vector<8x128xf32>
    %261 = math.tanh %260 : vector<8x128xf32>
    %cst_86 = arith.constant 5.000000e-01 : f32
    %262 = vector.broadcast %cst_86 : f32 to vector<8x128xf32>
    %263 = arith.mulf %262, %261 : vector<8x128xf32>
    %cst_87 = arith.constant 5.000000e-01 : f32
    %264 = vector.broadcast %cst_87 : f32 to vector<8x128xf32>
    %265 = arith.addf %263, %264 : vector<8x128xf32>
    %266 = vector.extract_strided_slice %249 {offsets = [0, 256], sizes = [8, 128], strides = [1, 1]} : vector<8x512xf32> to vector<8x128xf32>
    %267 = math.tanh %266 : vector<8x128xf32>
    %268 = vector.extract_strided_slice %249 {offsets = [0, 384], sizes = [8, 128], strides = [1, 1]} : vector<8x512xf32> to vector<8x128xf32>
    %cst_88 = arith.constant 5.000000e-01 : f32
    %269 = vector.broadcast %cst_88 : f32 to vector<8x128xf32>
    %270 = arith.mulf %269, %268 : vector<8x128xf32>
    %271 = math.tanh %270 : vector<8x128xf32>
    %cst_89 = arith.constant 5.000000e-01 : f32
    %272 = vector.broadcast %cst_89 : f32 to vector<8x128xf32>
    %273 = arith.mulf %272, %271 : vector<8x128xf32>
    %cst_90 = arith.constant 5.000000e-01 : f32
    %274 = vector.broadcast %cst_90 : f32 to vector<8x128xf32>
    %275 = arith.addf %273, %274 : vector<8x128xf32>
    %276 = arith.mulf %265, %244 : vector<8x128xf32>
    %277 = arith.mulf %257, %267 : vector<8x128xf32>
    %278 = arith.addf %276, %277 : vector<8x128xf32>
    %279 = math.tanh %278 : vector<8x128xf32>
    %280 = arith.mulf %275, %279 : vector<8x128xf32>
    %c0_91 = arith.constant 0 : index
    %c0_92 = arith.constant 0 : index
    %281 = vector.load %arg6[%c0_91, %c0_92] : memref<128x128xf32, #tpu.memory_space<vmem>>, vector<128x128xf32>
    %cst_93 = arith.constant dense<0.000000e+00> : vector<8x128xf32>
    %282 = tpu.matmul %280, %281, %cst_93 {dimension_numbers = #tpu.dot_dimension_numbers<[1], [0], [0], [1], [0, 0, 1, 1], [], []>} : vector<8x128xf32>, vector<128x128xf32>, vector<8x128xf32> -> vector<8x128xf32>
    %c0_94 = arith.constant 0 : index
    %c0_95 = arith.constant 0 : index
    %283 = vector.load %arg7[%c0_94, %c0_95] : memref<1x128xf32, #tpu.memory_space<vmem>>, vector<1x128xf32>
    %284 = vector.broadcast %283 : vector<1x128xf32> to vector<8x128xf32>
    %285 = arith.addf %282, %284 : vector<8x128xf32>
    %cst_96 = arith.constant 5.000000e-01 : f32
    %286 = vector.broadcast %cst_96 : f32 to vector<8x128xf32>
    %287 = arith.mulf %286, %285 : vector<8x128xf32>
    %288 = math.tanh %287 : vector<8x128xf32>
    %cst_97 = arith.constant 5.000000e-01 : f32
    %289 = vector.broadcast %cst_97 : f32 to vector<8x128xf32>
    %290 = arith.mulf %289, %288 : vector<8x128xf32>
    %cst_98 = arith.constant 5.000000e-01 : f32
    %291 = vector.broadcast %cst_98 : f32 to vector<8x128xf32>
    %292 = arith.addf %290, %291 : vector<8x128xf32>
    %c0_99 = arith.constant 0 : index
    %c0_100 = arith.constant 0 : index
    %293 = vector.load %arg8[%c0_99, %c0_100] : memref<8x128xf32, #tpu.memory_space<vmem>>, vector<8x128xf32>
    tpu.vector_store %arg8[%c0_99, %c0_100], %292 {strides = array<i32>} : memref<8x128xf32, #tpu.memory_space<vmem>>, vector<8x128xf32>,
    return
  }
}

</mosaic_0001>

<llo_original>
// kernel: tpu_custom_call.1
$region0: #{tpu_custom_call.1}
  #allocation0 [shape = 'u32[]', space=smem, size = 0x4, offset = 0x4, fixed_abs, tag = 'smem constant byte address 0x4 - core index']
  #allocation1 [shape = 'u32[144,128]{1,0:T(1,128)}', space=vmem, size = 0x12000, scoped, tag = 'internal scratch']
  %s0 = inlined_call_operand.vmem [shape: f32[64,4], index: 0, kind: input, shape index: {}]
  %s1 = inlined_call_operand.vmem [shape: f32[4,512], index: 1, kind: input, shape index: {}]
  %s2 = inlined_call_operand.hbm [shape: f32[128,512], index: 2, kind: input, shape index: {}]
  %s3 = inlined_call_operand.vmem [shape: f32[1,512], index: 3, kind: input, shape index: {}]
  %s4 = inlined_call_operand.vmem [shape: f32[8,128], index: 4, kind: input, shape index: {}]
  %s5 = inlined_call_operand.vmem [shape: f32[8,128], index: 5, kind: input, shape index: {}]
  %s6 = inlined_call_operand.hbm [shape: f32[128,128], index: 6, kind: input, shape index: {}]
  %s7 = inlined_call_operand.vmem [shape: f32[1,128], index: 7, kind: input, shape index: {}]
  %s8 = inlined_call_operand.hbm [shape: f32[8,128], index: 8, kind: output, shape index: {}]
  %s9 = sld [smem:[#allocation0]]
  $region50: #{tpu_custom_call.1} parent=0
    _
  %s11 = ssub.s32 1, %s9
  %s12 = scalar_select 0, %s11, %s9
  $region1: #{tpu_custom_call.1} parent=0
    #allocation2 [shape = 'u8[262144]{0}', space=vmem, size = 0x40000, scoped, tag = 'input window, operand 2, single buffered']
    #allocation3 [shape = 's32[1]{0}', space=sflag, size = 0x4, scoped, tag = 'scoped memory for tpu_custom_call.1']
    #allocation4 [shape = 's32[1]{0}', space=sflag, size = 0x4, scoped, tag = 'scoped memory for tpu_custom_call.1']
    #allocation5 [shape = 'u8[65536]{0}', space=vmem, size = 0x10000, scoped, tag = 'input window, operand 6, single buffered']
    #allocation6 [shape = 's32[1]{0}', space=sflag, size = 0x4, scoped, tag = 'scoped memory for tpu_custom_call.1']
    #allocation7 [shape = 'u8[4096]{0}', space=vmem, size = 0x1000, scoped, tag = 'output window, operand 0, single buffered']
    %13 = vsyncpa [#allocation3], 0
    %14 = vsyncpa [#allocation6], 0
    %15 = vsyncpa [#allocation4], 0
    // Predicated region
    $region2: #{tpu_custom_call.1} parent=1 // pred_check
      _
    $region3: #{tpu_custom_call.1} parent=1 // pred_check_branch
      %17 = sbr.rel (0) target = $region5
    $region4: #{tpu_custom_call.1} parent=1 // pred_region
      _
    $region5: #{tpu_custom_call.1} parent=1 // pred_fallthru
      _
    // Predicated region
    $region6: #{tpu_custom_call.1} parent=1 // pred_check
      _
    $region7: #{tpu_custom_call.1} parent=1 // pred_check_branch
      %19 = sbr.rel (0) target = $region9
    $region8: #{tpu_custom_call.1} parent=1 // pred_region
      _
    $region9: #{tpu_custom_call.1} parent=1 // pred_fallthru
      _
    // Predicated region
    $region10: #{tpu_custom_call.1} parent=1 // pred_check
      _
    $region11: #{tpu_custom_call.1} parent=1 // pred_check_branch
      %21 = sbr.rel (0) target = $region13
    $region12: #{tpu_custom_call.1} parent=1 // pred_region
      %s23 = ssub.s32 8192, 8192
      %24 = vsyncadd [#allocation3], %s23
      %s25 = sshll.u32 [#allocation2], 4
      %s26 = int_to_ptr.vmem [resolvable:$true] %s25
      %31 = dma.hbm_to_vmem [thread:$0]  %s2, 8192, %s26, [#allocation3], 512, 512, 32
    $region13: #{tpu_custom_call.1} parent=1 // pred_fallthru
      _
    // Predicated region
    $region14: #{tpu_custom_call.1} parent=1 // pred_check
      _
    $region15: #{tpu_custom_call.1} parent=1 // pred_check_branch
      %33 = sbr.rel (0) target = $region17
    $region16: #{tpu_custom_call.1} parent=1 // pred_region
      _
    $region17: #{tpu_custom_call.1} parent=1 // pred_fallthru
      _
    // Predicated region
    $region18: #{tpu_custom_call.1} parent=1 // pred_check
      _
    $region19: #{tpu_custom_call.1} parent=1 // pred_check_branch
      %35 = sbr.rel (0) target = $region21
    $region20: #{tpu_custom_call.1} parent=1 // pred_region
      _
    $region21: #{tpu_custom_call.1} parent=1 // pred_fallthru
      _
    // Predicated region
    $region22: #{tpu_custom_call.1} parent=1 // pred_check
      _
    $region23: #{tpu_custom_call.1} parent=1 // pred_check_branch
      %37 = sbr.rel (0) target = $region25
    $region24: #{tpu_custom_call.1} parent=1 // pred_region
      _
    $region25: #{tpu_custom_call.1} parent=1 // pred_fallthru
      _
    // Predicated region
    $region26: #{tpu_custom_call.1} parent=1 // pred_check
      _
    $region27: #{tpu_custom_call.1} parent=1 // pred_check_branch
      %39 = sbr.rel (0) target = $region29
    $region28: #{tpu_custom_call.1} parent=1 // pred_region
      %s41 = ssub.s32 2048, 2048
      %42 = vsyncadd [#allocation6], %s41
      %s43 = sshll.u32 [#allocation5], 4
      %s44 = int_to_ptr.vmem [resolvable:$true] %s43
      %49 = dma.hbm_to_vmem [thread:$0]  %s6, 2048, %s44, [#allocation6], 128, 128, 8
    $region29: #{tpu_custom_call.1} parent=1 // pred_fallthru
      _
    // Predicated region
    $region30: #{tpu_custom_call.1} parent=1 // pred_check
      _
    $region31: #{tpu_custom_call.1} parent=1 // pred_check_branch
      %51 = sbr.rel (0) target = $region33
    $region32: #{tpu_custom_call.1} parent=1 // pred_region
      _
    $region33: #{tpu_custom_call.1} parent=1 // pred_fallthru
      _
    // Predicated region
    $region34: #{tpu_custom_call.1} parent=1 // pred_check
      _
    $region35: #{tpu_custom_call.1} parent=1 // pred_check_branch
      %53 = sbr.rel (0) target = $region37
    $region36: #{tpu_custom_call.1} parent=1 // pred_region
      %54 = dma.done [#allocation3], 8192
    $region37: #{tpu_custom_call.1} parent=1 // pred_fallthru
      _
    // Predicated region
    $region38: #{tpu_custom_call.1} parent=1 // pred_check
      _
    $region39: #{tpu_custom_call.1} parent=1 // pred_check_branch
      %56 = sbr.rel (0) target = $region41
    $region40: #{tpu_custom_call.1} parent=1 // pred_region
      %57 = dma.done [#allocation6], 2048
    $region41: #{tpu_custom_call.1} parent=1 // pred_fallthru
      _
    %v58 = vld [vmem:[%s0] sm:$0xff]
    %v59 = vld [vmem:[%s0 + $0x8] sm:$0xff]
    %v60 = vld [vmem:[%s0 + $0x10] sm:$0xff]
    %v61 = vld [vmem:[%s0 + $0x18] sm:$0xff]
    %v62 = vld [vmem:[%s0 + $0x20] sm:$0xff]
    %v63 = vld [vmem:[%s0 + $0x28] sm:$0xff]
    %v64 = vld [vmem:[%s0 + $0x30] sm:$0xff]
    %v65 = vld [vmem:[%s0 + $0x38] sm:$0xff]
    %v66 = vld [vmem:[%s1] sm:$0xff]
    %v67 = vld [vmem:[%s1 + $0x8] sm:$0xff]
    %v68 = vld [vmem:[%s3] sm:$0xf]
    %v70 = vlaneseq
    %v71 = vshrl.u32 %v70, 7
    %v72 = vsub.s32 0, %v71
    %v73 = vrot.slane %v68, %v72
    %v74 = vlaneseq
    %v75 = vshrl.u32 %v74, 7
    %v76 = vsub.s32 1, %v75
    %v77 = vrot.slane %v68, %v76
    %v78 = vlaneseq
    %v79 = vshrl.u32 %v78, 7
    %v80 = vsub.s32 2, %v79
    %v81 = vrot.slane %v68, %v80
    %v82 = vlaneseq
    %v83 = vshrl.u32 %v82, 7
    %v84 = vsub.s32 3, %v83
    %v85 = vrot.slane %v68, %v84
    %v92 = vcombine.high %v66, %v66
    %v93 = vcombine.high %v67, %v67
    %vm94 = vcmask 31744
    %v96 = vsel %vm94, %v58, 0
    %v99 = vsel %vm94, %v59, 0
    %v102 = vsel %vm94, %v60, 0
    %v105 = vsel %vm94, %v61, 0
    %v108 = vsel %vm94, %v62, 0
    %v111 = vsel %vm94, %v63, 0
    %v114 = vsel %vm94, %v64, 0
    %v117 = vsel %vm94, %v65, 0
    %vm119 = vcmask 1043456
    %v120 = vsel %vm119, %v66, 0
    %v122 = vsel %vm119, %v92, 0
    %v124 = vsel %vm119, %v67, 0
    %v126 = vsel %vm119, %v93, 0
    %128 = vmatprep.subr.mxu0 %v122
    %129 = vmatpush1.msra.mxu0 %v120
    %130 = vmatprep.subr.mxu0 0.0
    %131 = vmatpush1.msra.mxu0 0.0
    %132 = vmatprep.subr.mxu0 0.0
    %133 = vmatpush1.msra.mxu0 0.0
    %134 = vmatprep.subr.mxu0 0.0
    %135 = vmatpush1.msra.mxu0 0.0
    %136 = vmatprep.subr.mxu0 0.0
    %137 = vmatpush1.msra.mxu0 0.0
    %138 = vmatprep.subr.mxu0 0.0
    %139 = vmatpush1.msra.mxu0 0.0
    %140 = vmatprep.subr.mxu0 0.0
    %141 = vmatpush1.msra.mxu0 0.0
    %142 = vmatprep.subr.mxu0 0.0
    %143 = vmatpush1.msra.mxu0 0.0
    %144 = vmatprep.subr.mxu0 0.0
    %145 = vmatpush1.msra.mxu0 0.0
    %146 = vmatprep.subr.mxu0 0.0
    %147 = vmatpush1.msra.mxu0 0.0
    %148 = vmatprep.subr.mxu0 0.0
    %149 = vmatpush1.msra.mxu0 0.0
    %150 = vmatprep.subr.mxu0 0.0
    %151 = vmatpush1.msra.mxu0 0.0
    %152 = vmatprep.subr.mxu0 0.0
    %153 = vmatpush1.msra.mxu0 0.0
    %154 = vmatprep.subr.mxu0 0.0
    %155 = vmatpush1.msra.mxu0 0.0
    %156 = vmatprep.subr.mxu0 0.0
    %157 = vmatpush1.msra.mxu0 0.0
    %158 = vmatprep.subr.mxu0 0.0
    %159 = vmatpush1.msra.mxu0 0.0
    %160 = vmatprep.subr.mxu0 0.0
    %161 = vmatpush1.msra.mxu0 0.0
    %162 = vmatprep.subr.mxu0 0.0
    %163 = vmatpush1.msra.mxu0 0.0
    %164 = vmatprep.subr.mxu0 0.0
    %165 = vmatpush1.msra.mxu0 0.0
    %166 = vmatprep.subr.mxu0 0.0
    %167 = vmatpush1.msra.mxu0 0.0
    %168 = vmatprep.subr.mxu0 0.0
    %169 = vmatpush1.msra.mxu0 0.0
    %170 = vmatprep.subr.mxu0 0.0
    %171 = vmatpush1.msra.mxu0 0.0
    %172 = vmatprep.subr.mxu0 0.0
    %173 = vmatpush1.msra.mxu0 0.0
    %174 = vmatprep.subr.mxu0 0.0
    %175 = vmatpush1.msra.mxu0 0.0
    %176 = vmatprep.subr.mxu0 0.0
    %177 = vmatpush1.msra.mxu0 0.0
    %178 = vmatprep.subr.mxu0 0.0
    %179 = vmatpush1.msra.mxu0 0.0
    %180 = vmatprep.subr.mxu0 0.0
    %181 = vmatpush1.msra.mxu0 0.0
    %182 = vmatprep.subr.mxu0 0.0
    %183 = vmatpush1.msra.mxu0 0.0
    %184 = vmatprep.subr.mxu0 0.0
    %185 = vmatpush1.msra.mxu0 0.0
    %186 = vmatprep.subr.mxu0 0.0
    %187 = vmatpush1.msra.mxu0 0.0
    %188 = vmatprep.subr.mxu0 0.0
    %189 = vmatpush1.msra.mxu0 0.0
    %190 = vmatprep.subr.mxu0 0.0
    %191 = vmatpush1.msra.mxu0 0.0
    %192 = vmatprep.mubr.f32.mxu0 0.0
    %193 = vmatmul.mubr.f32.gmra.mrb[0].mxu0 %v96
    %v194 = vpop.f32.mrb[0].mxu0
    %v195 = vadd.f32 %v73, %v194
    %v196 = vpop.f32.mrb[0].mxu0
    %v197 = vadd.f32 %v77, %v196
    %198 = vmatprep.mubr.f32.mxu0 0.0
    %199 = vmatmul.mubr.f32.gmra.mrb[0].mxu0 %v99
    %v200 = vpop.f32.mrb[0].mxu0
    %v201 = vadd.f32 %v73, %v200
    %v202 = vpop.f32.mrb[0].mxu0
    %v203 = vadd.f32 %v77, %v202
    %204 = vmatprep.mubr.f32.mxu0 0.0
    %205 = vmatmul.mubr.f32.gmra.mrb[0].mxu0 %v102
    %v206 = vpop.f32.mrb[0].mxu0
    %v207 = vadd.f32 %v73, %v206
    %v208 = vpop.f32.mrb[0].mxu0
    %v209 = vadd.f32 %v77, %v208
    %210 = vmatprep.mubr.f32.mxu0 0.0
    %211 = vmatmul.mubr.f32.gmra.mrb[0].mxu0 %v105
    %v212 = vpop.f32.mrb[0].mxu0
    %v213 = vadd.f32 %v73, %v212
    %v214 = vpop.f32.mrb[0].mxu0
    %v215 = vadd.f32 %v77, %v214
    %216 = vmatprep.mubr.f32.mxu0 0.0
    %217 = vmatmul.mubr.f32.gmra.mrb[0].mxu0 %v108
    %v218 = vpop.f32.mrb[0].mxu0
    %v219 = vadd.f32 %v73, %v218
    %v220 = vpop.f32.mrb[0].mxu0
    %v221 = vadd.f32 %v77, %v220
    %222 = vmatprep.mubr.f32.mxu0 0.0
    %223 = vmatmul.mubr.f32.gmra.mrb[0].mxu0 %v111
    %v224 = vpop.f32.mrb[0].mxu0
    %v225 = vadd.f32 %v73, %v224
    %v226 = vpop.f32.mrb[0].mxu0
    %v227 = vadd.f32 %v77, %v226
    %228 = vmatprep.mubr.f32.mxu0 0.0
    %229 = vmatmul.mubr.f32.gmra.mrb[0].mxu0 %v114
    %v230 = vpop.f32.mrb[0].mxu0
    %v231 = vadd.f32 %v73, %v230
    %v232 = vpop.f32.mrb[0].mxu0
    %v233 = vadd.f32 %v77, %v232
    %234 = vmatprep.mubr.f32.mxu0 0.0
    %235 = vmatmul.mubr.f32.gmra.mrb[0].mxu0 %v117
    %v236 = vpop.f32.mrb[0].mxu0
    %v237 = vadd.f32 %v73, %v236
    %v238 = vpop.f32.mrb[0].mxu0
    %v239 = vadd.f32 %v77, %v238
    %240 = vdwg.mxu0
    %241 = vmatprep.subr.mxu0 %v126
    %242 = vmatpush1.msra.mxu0 %v124
    %243 = vmatprep.subr.mxu0 0.0
    %244 = vmatpush1.msra.mxu0 0.0
    %245 = vmatprep.subr.mxu0 0.0
    %246 = vmatpush1.msra.mxu0 0.0
    %247 = vmatprep.subr.mxu0 0.0
    %248 = vmatpush1.msra.mxu0 0.0
    %249 = vmatprep.subr.mxu0 0.0
    %250 = vmatpush1.msra.mxu0 0.0
    %251 = vmatprep.subr.mxu0 0.0
    %252 = vmatpush1.msra.mxu0 0.0
    %253 = vmatprep.subr.mxu0 0.0
    %254 = vmatpush1.msra.mxu0 0.0
    %255 = vmatprep.subr.mxu0 0.0
    %256 = vmatpush1.msra.mxu0 0.0
    %257 = vmatprep.subr.mxu0 0.0
    %258 = vmatpush1.msra.mxu0 0.0
    %259 = vmatprep.subr.mxu0 0.0
    %260 = vmatpush1.msra.mxu0 0.0
    %261 = vmatprep.subr.mxu0 0.0
    %262 = vmatpush1.msra.mxu0 0.0
    %263 = vmatprep.subr.mxu0 0.0
    %264 = vmatpush1.msra.mxu0 0.0
    %265 = vmatprep.subr.mxu0 0.0
    %266 = vmatpush1.msra.mxu0 0.0
    %267 = vmatprep.subr.mxu0 0.0
    %268 = vmatpush1.msra.mxu0 0.0
    %269 = vmatprep.subr.mxu0 0.0
    %270 = vmatpush1.msra.mxu0 0.0
    %271 = vmatprep.subr.mxu0 0.0
    %272 = vmatpush1.msra.mxu0 0.0
    %273 = vmatprep.subr.mxu0 0.0
    %274 = vmatpush1.msra.mxu0 0.0
    %275 = vmatprep.subr.mxu0 0.0
    %276 = vmatpush1.msra.mxu0 0.0
    %277 = vmatprep.subr.mxu0 0.0
    %278 = vmatpush1.msra.mxu0 0.0
    %279 = vmatprep.subr.mxu0 0.0
    %280 = vmatpush1.msra.mxu0 0.0
    %281 = vmatprep.subr.mxu0 0.0
    %282 = vmatpush1.msra.mxu0 0.0
    %283 = vmatprep.subr.mxu0 0.0
    %284 = vmatpush1.msra.mxu0 0.0
    %285 = vmatprep.subr.mxu0 0.0
    %286 = vmatpush1.msra.mxu0 0.0
    %287 = vmatprep.subr.mxu0 0.0
    %288 = vmatpush1.msra.mxu0 0.0
    %289 = vmatprep.subr.mxu0 0.0
    %290 = vmatpush1.msra.mxu0 0.0
    %291 = vmatprep.subr.mxu0 0.0
    %292 = vmatpush1.msra.mxu0 0.0
    %293 = vmatprep.subr.mxu0 0.0
    %294 = vmatpush1.msra.mxu0 0.0
    %295 = vmatprep.subr.mxu0 0.0
    %296 = vmatpush1.msra.mxu0 0.0
    %297 = vmatprep.subr.mxu0 0.0
    %298 = vmatpush1.msra.mxu0 0.0
    %299 = vmatprep.subr.mxu0 0.0
    %300 = vmatpush1.msra.mxu0 0.0
    %301 = vmatprep.subr.mxu0 0.0
    %302 = vmatpush1.msra.mxu0 0.0
    %303 = vmatprep.subr.mxu0 0.0
    %304 = vmatpush1.msra.mxu0 0.0
    %305 = vmatprep.mubr.f32.mxu0 0.0
    %306 = vmatmul.mubr.f32.gmra.mrb[0].mxu0 %v96
    %v307 = vpop.f32.mrb[0].mxu0
    %v308 = vadd.f32 %v81, %v307
    %v309 = vpop.f32.mrb[0].mxu0
    %v310 = vadd.f32 %v85, %v309
    %311 = vmatprep.mubr.f32.mxu0 0.0
    %312 = vmatmul.mubr.f32.gmra.mrb[0].mxu0 %v99
    %v313 = vpop.f32.mrb[0].mxu0
    %v314 = vadd.f32 %v81, %v313
    %v315 = vpop.f32.mrb[0].mxu0
    %v316 = vadd.f32 %v85, %v315
    %317 = vmatprep.mubr.f32.mxu0 0.0
    %318 = vmatmul.mubr.f32.gmra.mrb[0].mxu0 %v102
    %v319 = vpop.f32.mrb[0].mxu0
    %v320 = vadd.f32 %v81, %v319
    %v321 = vpop.f32.mrb[0].mxu0
    %v322 = vadd.f32 %v85, %v321
    %323 = vmatprep.mubr.f32.mxu0 0.0
    %324 = vmatmul.mubr.f32.gmra.mrb[0].mxu0 %v105
    %v325 = vpop.f32.mrb[0].mxu0
    %v326 = vadd.f32 %v81, %v325
    %v327 = vpop.f32.mrb[0].mxu0
    %v328 = vadd.f32 %v85, %v327
    %329 = vmatprep.mubr.f32.mxu0 0.0
    %330 = vmatmul.mubr.f32.gmra.mrb[0].mxu0 %v108
    %v331 = vpop.f32.mrb[0].mxu0
    %v332 = vadd.f32 %v81, %v331
    %v333 = vpop.f32.mrb[0].mxu0
    %v334 = vadd.f32 %v85, %v333
    %335 = vmatprep.mubr.f32.mxu0 0.0
    %336 = vmatmul.mubr.f32.gmra.mrb[0].mxu0 %v111
    %v337 = vpop.f32.mrb[0].mxu0
    %v338 = vadd.f32 %v81, %v337
    %v339 = vpop.f32.mrb[0].mxu0
    %v340 = vadd.f32 %v85, %v339
    %341 = vmatprep.mubr.f32.mxu0 0.0
    %342 = vmatmul.mubr.f32.gmra.mrb[0].mxu0 %v114
    %v343 = vpop.f32.mrb[0].mxu0
    %v344 = vadd.f32 %v81, %v343
    %v345 = vpop.f32.mrb[0].mxu0
    %v346 = vadd.f32 %v85, %v345
    %347 = vmatprep.mubr.f32.mxu0 0.0
    %348 = vmatmul.mubr.f32.gmra.mrb[0].mxu0 %v117
    %v349 = vpop.f32.mrb[0].mxu0
    %v350 = vadd.f32 %v81, %v349
    %v351 = vpop.f32.mrb[0].mxu0
    %v352 = vadd.f32 %v85, %v351
    %353 = vdwg.mxu0
    %v354 = vld [vmem:[#allocation2] sm:$0xff]
    %v355 = vld [vmem:[#allocation2 + $0x8] sm:$0xff]
    %v356 = vld [vmem:[#allocation2 + $0x10] sm:$0xff]
    %v357 = vld [vmem:[#allocation2 + $0x18] sm:$0xff]
    %v358 = vld [vmem:[#allocation2 + $0x20] sm:$0xff]
    %v359 = vld [vmem:[#allocation2 + $0x28] sm:$0xff]
    %v360 = vld [vmem:[#allocation2 + $0x30] sm:$0xff]
    %v361 = vld [vmem:[#allocation2 + $0x38] sm:$0xff]
    %v362 = vld [vmem:[#allocation2 + $0x40] sm:$0xff]
    %v363 = vld [vmem:[#allocation2 + $0x48] sm:$0xff]
    %v364 = vld [vmem:[#allocation2 + $0x50] sm:$0xff]
    %v365 = vld [vmem:[#allocation2 + $0x58] sm:$0xff]
    %v366 = vld [vmem:[#allocation2 + $0x60] sm:$0xff]
    %v367 = vld [vmem:[#allocation2 + $0x68] sm:$0xff]
    %v368 = vld [vmem:[#allocation2 + $0x70] sm:$0xff]
    %v369 = vld [vmem:[#allocation2 + $0x78] sm:$0xff]
    %v370 = vld [vmem:[#allocation2 + $0x80] sm:$0xff]
    %v371 = vld [vmem:[#allocation2 + $0x88] sm:$0xff]
    %v372 = vld [vmem:[#allocation2 + $0x90] sm:$0xff]
    %v373 = vld [vmem:[#allocation2 + $0x98] sm:$0xff]
    %v374 = vld [vmem:[#allocation2 + $0xa0] sm:$0xff]
    %v375 = vld [vmem:[#allocation2 + $0xa8] sm:$0xff]
    %v376 = vld [vmem:[#allocation2 + $0xb0] sm:$0xff]
    %v377 = vld [vmem:[#allocation2 + $0xb8] sm:$0xff]
    %v378 = vld [vmem:[#allocation2 + $0xc0] sm:$0xff]
    %v379 = vld [vmem:[#allocation2 + $0xc8] sm:$0xff]
    %v380 = vld [vmem:[#allocation2 + $0xd0] sm:$0xff]
    %v381 = vld [vmem:[#allocation2 + $0xd8] sm:$0xff]
    %v382 = vld [vmem:[#allocation2 + $0xe0] sm:$0xff]
    %v383 = vld [vmem:[#allocation2 + $0xe8] sm:$0xff]
    %v384 = vld [vmem:[#allocation2 + $0xf0] sm:$0xff]
    %v385 = vld [vmem:[#allocation2 + $0xf8] sm:$0xff]
    %v386 = vld [vmem:[#allocation2 + $0x100] sm:$0xff]
    %v387 = vld [vmem:[#allocation2 + $0x108] sm:$0xff]
    %v388 = vld [vmem:[#allocation2 + $0x110] sm:$0xff]
    %v389 = vld [vmem:[#allocation2 + $0x118] sm:$0xff]
    %v390 = vld [vmem:[#allocation2 + $0x120] sm:$0xff]
    %v391 = vld [vmem:[#allocation2 + $0x128] sm:$0xff]
    %v392 = vld [vmem:[#allocation2 + $0x130] sm:$0xff]
    %v393 = vld [vmem:[#allocation2 + $0x138] sm:$0xff]
    %v394 = vld [vmem:[#allocation2 + $0x140] sm:$0xff]
    %v395 = vld [vmem:[#allocation2 + $0x148] sm:$0xff]
    %v396 = vld [vmem:[#allocation2 + $0x150] sm:$0xff]
    %v397 = vld [vmem:[#allocation2 + $0x158] sm:$0xff]
    %v398 = vld [vmem:[#allocation2 + $0x160] sm:$0xff]
    %v399 = vld [vmem:[#allocation2 + $0x168] sm:$0xff]
    %v400 = vld [vmem:[#allocation2 + $0x170] sm:$0xff]
    %v401 = vld [vmem:[#allocation2 + $0x178] sm:$0xff]
    %v402 = vld [vmem:[#allocation2 + $0x180] sm:$0xff]
    %v403 = vld [vmem:[#allocation2 + $0x188] sm:$0xff]
    %v404 = vld [vmem:[#allocation2 + $0x190] sm:$0xff]
    %v405 = vld [vmem:[#allocation2 + $0x198] sm:$0xff]
    %v406 = vld [vmem:[#allocation2 + $0x1a0] sm:$0xff]
    %v407 = vld [vmem:[#allocation2 + $0x1a8] sm:$0xff]
    %v408 = vld [vmem:[#allocation2 + $0x1b0] sm:$0xff]
    %v409 = vld [vmem:[#allocation2 + $0x1b8] sm:$0xff]
    %v410 = vld [vmem:[#allocation2 + $0x1c0] sm:$0xff]
    %v411 = vld [vmem:[#allocation2 + $0x1c8] sm:$0xff]
    %v412 = vld [vmem:[#allocation2 + $0x1d0] sm:$0xff]
    %v413 = vld [vmem:[#allocation2 + $0x1d8] sm:$0xff]
    %v414 = vld [vmem:[#allocation2 + $0x1e0] sm:$0xff]
    %v415 = vld [vmem:[#allocation2 + $0x1e8] sm:$0xff]
    %v416 = vld [vmem:[#allocation2 + $0x1f0] sm:$0xff]
    %v417 = vld [vmem:[#allocation2 + $0x1f8] sm:$0xff]
    %v418 = vld [vmem:[%s4] sm:$0xff]
    %v419 = vld [vmem:[%s5] sm:$0xff]
    %420 = vmatprep.subr.mxu0 %v355
    %421 = vmatpush1.msra.mxu0 %v354
    %422 = vmatprep.subr.mxu0 %v359
    %423 = vmatpush1.msra.mxu0 %v358
    %424 = vmatprep.subr.mxu0 %v363
    %425 = vmatpush1.msra.mxu0 %v362
    %426 = vmatprep.subr.mxu0 %v367
    %427 = vmatpush1.msra.mxu0 %v366
    %428 = vmatprep.subr.mxu0 %v371
    %429 = vmatpush1.msra.mxu0 %v370
    %430 = vmatprep.subr.mxu0 %v375
    %431 = vmatpush1.msra.mxu0 %v374
    %432 = vmatprep.subr.mxu0 %v379
    %433 = vmatpush1.msra.mxu0 %v378
    %434 = vmatprep.subr.mxu0 %v383
    %435 = vmatpush1.msra.mxu0 %v382
    %436 = vmatprep.subr.mxu0 %v387
    %437 = vmatpush1.msra.mxu0 %v386
    %438 = vmatprep.subr.mxu0 %v391
    %439 = vmatpush1.msra.mxu0 %v390
    %440 = vmatprep.subr.mxu0 %v395
    %441 = vmatpush1.msra.mxu0 %v394
    %442 = vmatprep.subr.mxu0 %v399
    %443 = vmatpush1.msra.mxu0 %v398
    %444 = vmatprep.subr.mxu0 %v403
    %445 = vmatpush1.msra.mxu0 %v402
    %446 = vmatprep.subr.mxu0 %v407
    %447 = vmatpush1.msra.mxu0 %v406
    %448 = vmatprep.subr.mxu0 %v411
    %449 = vmatpush1.msra.mxu0 %v410
    %450 = vmatprep.subr.mxu0 %v415
    %451 = vmatpush1.msra.mxu0 %v414
    %452 = vmatprep.subr.mxu0 0.0
    %453 = vmatpush1.msra.mxu0 0.0
    %454 = vmatprep.subr.mxu0 0.0
    %455 = vmatpush1.msra.mxu0 0.0
    %456 = vmatprep.subr.mxu0 0.0
    %457 = vmatpush1.msra.mxu0 0.0
    %458 = vmatprep.subr.mxu0 0.0
    %459 = vmatpush1.msra.mxu0 0.0
    %460 = vmatprep.subr.mxu0 0.0
    %461 = vmatpush1.msra.mxu0 0.0
    %462 = vmatprep.subr.mxu0 0.0
    %463 = vmatpush1.msra.mxu0 0.0
    %464 = vmatprep.subr.mxu0 0.0
    %465 = vmatpush1.msra.mxu0 0.0
    %466 = vmatprep.subr.mxu0 0.0
    %467 = vmatpush1.msra.mxu0 0.0
    %468 = vmatprep.subr.mxu0 0.0
    %469 = vmatpush1.msra.mxu0 0.0
    %470 = vmatprep.subr.mxu0 0.0
    %471 = vmatpush1.msra.mxu0 0.0
    %472 = vmatprep.subr.mxu0 0.0
    %473 = vmatpush1.msra.mxu0 0.0
    %474 = vmatprep.subr.mxu0 0.0
    %475 = vmatpush1.msra.mxu0 0.0
    %476 = vmatprep.subr.mxu0 0.0
    %477 = vmatpush1.msra.mxu0 0.0
    %478 = vmatprep.subr.mxu0 0.0
    %479 = vmatpush1.msra.mxu0 0.0
    %480 = vmatprep.subr.mxu0 0.0
    %481 = vmatpush1.msra.mxu0 0.0
    %482 = vmatprep.subr.mxu0 0.0
    %483 = vmatpush1.msra.mxu0 0.0
    %484 = vmatprep.mubr.f32.mxu0 0.0
    %485 = vmatmul.mubr.f32.gmra.mrb[0].mxu0 %v418
    %v486 = vpop.f32.mrb[0].mxu0
    %v487 = vadd.f32 0.0, %v486
    %v488 = vpop.f32.mrb[0].mxu0
    %v489 = vadd.f32 0.0, %v488
    %490 = vdwg.mxu0
    %491 = vmatprep.subr.mxu0 %v357
    %492 = vmatpush1.msra.mxu0 %v356
    %493 = vmatprep.subr.mxu0 %v361
    %494 = vmatpush1.msra.mxu0 %v360
    %495 = vmatprep.subr.mxu0 %v365
    %496 = vmatpush1.msra.mxu0 %v364
    %497 = vmatprep.subr.mxu0 %v369
    %498 = vmatpush1.msra.mxu0 %v368
    %499 = vmatprep.subr.mxu0 %v373
    %500 = vmatpush1.msra.mxu0 %v372
    %501 = vmatprep.subr.mxu0 %v377
    %502 = vmatpush1.msra.mxu0 %v376
    %503 = vmatprep.subr.mxu0 %v381
    %504 = vmatpush1.msra.mxu0 %v380
    %505 = vmatprep.subr.mxu0 %v385
    %506 = vmatpush1.msra.mxu0 %v384
    %507 = vmatprep.subr.mxu0 %v389
    %508 = vmatpush1.msra.mxu0 %v388
    %509 = vmatprep.subr.mxu0 %v393
    %510 = vmatpush1.msra.mxu0 %v392
    %511 = vmatprep.subr.mxu0 %v397
    %512 = vmatpush1.msra.mxu0 %v396
    %513 = vmatprep.subr.mxu0 %v401
    %514 = vmatpush1.msra.mxu0 %v400
    %515 = vmatprep.subr.mxu0 %v405
    %516 = vmatpush1.msra.mxu0 %v404
    %517 = vmatprep.subr.mxu0 %v409
    %518 = vmatpush1.msra.mxu0 %v408
    %519 = vmatprep.subr.mxu0 %v413
    %520 = vmatpush1.msra.mxu0 %v412
    %521 = vmatprep.subr.mxu0 %v417
    %522 = vmatpush1.msra.mxu0 %v416
    %523 = vmatprep.subr.mxu0 0.0
    %524 = vmatpush1.msra.mxu0 0.0
    %525 = vmatprep.subr.mxu0 0.0
    %526 = vmatpush1.msra.mxu0 0.0
    %527 = vmatprep.subr.mxu0 0.0
    %528 = vmatpush1.msra.mxu0 0.0
    %529 = vmatprep.subr.mxu0 0.0
    %530 = vmatpush1.msra.mxu0 0.0
    %531 = vmatprep.subr.mxu0 0.0
    %532 = vmatpush1.msra.mxu0 0.0
    %533 = vmatprep.subr.mxu0 0.0
    %534 = vmatpush1.msra.mxu0 0.0
    %535 = vmatprep.subr.mxu0 0.0
    %536 = vmatpush1.msra.mxu0 0.0
    %537 = vmatprep.subr.mxu0 0.0
    %538 = vmatpush1.msra.mxu0 0.0
    %539 = vmatprep.subr.mxu0 0.0
    %540 = vmatpush1.msra.mxu0 0.0
    %541 = vmatprep.subr.mxu0 0.0
    %542 = vmatpush1.msra.mxu0 0.0
    %543 = vmatprep.subr.mxu0 0.0
    %544 = vmatpush1.msra.mxu0 0.0
    %545 = vmatprep.subr.mxu0 0.0
    %546 = vmatpush1.msra.mxu0 0.0
    %547 = vmatprep.subr.mxu0 0.0
    %548 = vmatpush1.msra.mxu0 0.0
    %549 = vmatprep.subr.mxu0 0.0
    %550 = vmatpush1.msra.mxu0 0.0
    %551 = vmatprep.subr.mxu0 0.0
    %552 = vmatpush1.msra.mxu0 0.0
    %553 = vmatprep.subr.mxu0 0.0
    %554 = vmatpush1.msra.mxu0 0.0
    %555 = vmatprep.mubr.f32.mxu0 0.0
    %556 = vmatmul.mubr.f32.gmra.mrb[0].mxu0 %v418
    %v557 = vpop.f32.mrb[0].mxu0
    %v558 = vadd.f32 0.0, %v557
    %v559 = vpop.f32.mrb[0].mxu0
    %v560 = vadd.f32 0.0, %v559
    %561 = vdwg.mxu0
    %v562 = vadd.f32 %v195, %v487
    %v563 = vadd.f32 %v197, %v489
    %v564 = vadd.f32 %v308, %v558
    %v565 = vadd.f32 %v310, %v560
    %v566 = vmul.f32 %v562, 0.5
    %v567 = vtanh.pop %v566
    %v568 = vmul.f32 %v567, 0.5
    %v569 = vadd.f32 %v568, 0.5
    %v570 = vmul.f32 %v563, 0.5
    %v571 = vtanh.pop %v570
    %v572 = vmul.f32 %v571, 0.5
    %v573 = vadd.f32 %v572, 0.5
    %v574 = vtanh.pop %v564
    %v575 = vmul.f32 %v565, 0.5
    %v576 = vtanh.pop %v575
    %v577 = vmul.f32 %v576, 0.5
    %v578 = vadd.f32 %v577, 0.5
    %v579 = vmul.f32 %v573, %v419
    %v580 = vmul.f32 %v569, %v574
    %v581 = vadd.f32 %v579, %v580
    %v582 = vtanh.pop %v581
    %v583 = vmul.f32 %v578, %v582
    %584 = vmatprep.subr.mxu0 %v355
    %585 = vmatpush1.msra.mxu0 %v354
    %586 = vmatprep.subr.mxu0 %v359
    %587 = vmatpush1.msra.mxu0 %v358
    %588 = vmatprep.subr.mxu0 %v363
    %589 = vmatpush1.msra.mxu0 %v362
    %590 = vmatprep.subr.mxu0 %v367
    %591 = vmatpush1.msra.mxu0 %v366
    %592 = vmatprep.subr.mxu0 %v371
    %593 = vmatpush1.msra.mxu0 %v370
    %594 = vmatprep.subr.mxu0 %v375
    %595 = vmatpush1.msra.mxu0 %v374
    %596 = vmatprep.subr.mxu0 %v379
    %597 = vmatpush1.msra.mxu0 %v378
    %598 = vmatprep.subr.mxu0 %v383
    %599 = vmatpush1.msra.mxu0 %v382
    %600 = vmatprep.subr.mxu0 %v387
    %601 = vmatpush1.msra.mxu0 %v386
    %602 = vmatprep.subr.mxu0 %v391
    %603 = vmatpush1.msra.mxu0 %v390
    %604 = vmatprep.subr.mxu0 %v395
    %605 = vmatpush1.msra.mxu0 %v394
    %606 = vmatprep.subr.mxu0 %v399
    %607 = vmatpush1.msra.mxu0 %v398
    %608 = vmatprep.subr.mxu0 %v403
    %609 = vmatpush1.msra.mxu0 %v402
    %610 = vmatprep.subr.mxu0 %v407
    %611 = vmatpush1.msra.mxu0 %v406
    %612 = vmatprep.subr.mxu0 %v411
    %613 = vmatpush1.msra.mxu0 %v410
    %614 = vmatprep.subr.mxu0 %v415
    %615 = vmatpush1.msra.mxu0 %v414
    %616 = vmatprep.subr.mxu0 0.0
    %617 = vmatpush1.msra.mxu0 0.0
    %618 = vmatprep.subr.mxu0 0.0
    %619 = vmatpush1.msra.mxu0 0.0
    %620 = vmatprep.subr.mxu0 0.0
    %621 = vmatpush1.msra.mxu0 0.0
    %622 = vmatprep.subr.mxu0 0.0
    %623 = vmatpush1.msra.mxu0 0.0
    %624 = vmatprep.subr.mxu0 0.0
    %625 = vmatpush1.msra.mxu0 0.0
    %626 = vmatprep.subr.mxu0 0.0
    %627 = vmatpush1.msra.mxu0 0.0
    %628 = vmatprep.subr.mxu0 0.0
    %629 = vmatpush1.msra.mxu0 0.0
    %630 = vmatprep.subr.mxu0 0.0
    %631 = vmatpush1.msra.mxu0 0.0
    %632 = vmatprep.subr.mxu0 0.0
    %633 = vmatpush1.msra.mxu0 0.0
    %634 = vmatprep.subr.mxu0 0.0
    %635 = vmatpush1.msra.mxu0 0.0
    %636 = vmatprep.subr.mxu0 0.0
    %637 = vmatpush1.msra.mxu0 0.0
    %638 = vmatprep.subr.mxu0 0.0
    %639 = vmatpush1.msra.mxu0 0.0
    %640 = vmatprep.subr.mxu0 0.0
    %641 = vmatpush1.msra.mxu0 0.0
    %642 = vmatprep.subr.mxu0 0.0
    %643 = vmatpush1.msra.mxu0 0.0
    %644 = vmatprep.subr.mxu0 0.0
    %645 = vmatpush1.msra.mxu0 0.0
    %646 = vmatprep.subr.mxu0 0.0
    %647 = vmatpush1.msra.mxu0 0.0
    %648 = vmatprep.mubr.f32.mxu0 0.0
    %649 = vmatmul.mubr.f32.gmra.mrb[0].mxu0 %v583
    %v650 = vpop.f32.mrb[0].mxu0
    %v651 = vadd.f32 0.0, %v650
    %v652 = vpop.f32.mrb[0].mxu0
    %v653 = vadd.f32 0.0, %v652
    %654 = vdwg.mxu0
    %655 = vmatprep.subr.mxu0 %v357
    %656 = vmatpush1.msra.mxu0 %v356
    %657 = vmatprep.subr.mxu0 %v361
    %658 = vmatpush1.msra.mxu0 %v360
    %659 = vmatprep.subr.mxu0 %v365
    %660 = vmatpush1.msra.mxu0 %v364
    %661 = vmatprep.subr.mxu0 %v369
    %662 = vmatpush1.msra.mxu0 %v368
    %663 = vmatprep.subr.mxu0 %v373
    %664 = vmatpush1.msra.mxu0 %v372
    %665 = vmatprep.subr.mxu0 %v377
    %666 = vmatpush1.msra.mxu0 %v376
    %667 = vmatprep.subr.mxu0 %v381
    %668 = vmatpush1.msra.mxu0 %v380
    %669 = vmatprep.subr.mxu0 %v385
    %670 = vmatpush1.msra.mxu0 %v384
    %671 = vmatprep.subr.mxu0 %v389
    %672 = vmatpush1.msra.mxu0 %v388
    %673 = vmatprep.subr.mxu0 %v393
    %674 = vmatpush1.msra.mxu0 %v392
    %675 = vmatprep.subr.mxu0 %v397
    %676 = vmatpush1.msra.mxu0 %v396
    %677 = vmatprep.subr.mxu0 %v401
    %678 = vmatpush1.msra.mxu0 %v400
    %679 = vmatprep.subr.mxu0 %v405
    %680 = vmatpush1.msra.mxu0 %v404
    %681 = vmatprep.subr.mxu0 %v409
    %682 = vmatpush1.msra.mxu0 %v408
    %683 = vmatprep.subr.mxu0 %v413
    %684 = vmatpush1.msra.mxu0 %v412
    %685 = vmatprep.subr.mxu0 %v417
    %686 = vmatpush1.msra.mxu0 %v416
    %687 = vmatprep.subr.mxu0 0.0
    %688 = vmatpush1.msra.mxu0 0.0
    %689 = vmatprep.subr.mxu0 0.0
    %690 = vmatpush1.msra.mxu0 0.0
    %691 = vmatprep.subr.mxu0 0.0
    %692 = vmatpush1.msra.mxu0 0.0
    %693 = vmatprep.subr.mxu0 0.0
    %694 = vmatpush1.msra.mxu0 0.0
    %695 = vmatprep.subr.mxu0 0.0
    %696 = vmatpush1.msra.mxu0 0.0
    %697 = vmatprep.subr.mxu0 0.0
    %698 = vmatpush1.msra.mxu0 0.0
    %699 = vmatprep.subr.mxu0 0.0
    %700 = vmatpush1.msra.mxu0 0.0
    %701 = vmatprep.subr.mxu0 0.0
    %702 = vmatpush1.msra.mxu0 0.0
    %703 = vmatprep.subr.mxu0 0.0
    %704 = vmatpush1.msra.mxu0 0.0
    %705 = vmatprep.subr.mxu0 0.0
    %706 = vmatpush1.msra.mxu0 0.0
    %707 = vmatprep.subr.mxu0 0.0
    %708 = vmatpush1.msra.mxu0 0.0
    %709 = vmatprep.subr.mxu0 0.0
    %710 = vmatpush1.msra.mxu0 0.0
    %711 = vmatprep.subr.mxu0 0.0
    %712 = vmatpush1.msra.mxu0 0.0
    %713 = vmatprep.subr.mxu0 0.0
    %714 = vmatpush1.msra.mxu0 0.0
    %715 = vmatprep.subr.mxu0 0.0
    %716 = vmatpush1.msra.mxu0 0.0
    %717 = vmatprep.subr.mxu0 0.0
    %718 = vmatpush1.msra.mxu0 0.0
    %719 = vmatprep.mubr.f32.mxu0 0.0
    %720 = vmatmul.mubr.f32.gmra.mrb[0].mxu0 %v583
    %v721 = vpop.f32.mrb[0].mxu0
    %v722 = vadd.f32 0.0, %v721
    %v723 = vpop.f32.mrb[0].mxu0
    %v724 = vadd.f32 0.0, %v723
    %725 = vdwg.mxu0
    %v726 = vadd.f32 %v201, %v651
    %v727 = vadd.f32 %v203, %v653
    %v728 = vadd.f32 %v314, %v722
    %v729 = vadd.f32 %v316, %v724
    %v730 = vmul.f32 %v726, 0.5
    %v731 = vtanh.pop %v730
    %v732 = vmul.f32 %v731, 0.5
    %v733 = vadd.f32 %v732, 0.5
    %v734 = vmul.f32 %v727, 0.5
    %v735 = vtanh.pop %v734
    %v736 = vmul.f32 %v735, 0.5
    %v737 = vadd.f32 %v736, 0.5
    %v738 = vtanh.pop %v728
    %v739 = vmul.f32 %v729, 0.5
    %v740 = vtanh.pop %v739
    %v741 = vmul.f32 %v740, 0.5
    %v742 = vadd.f32 %v741, 0.5
    %v743 = vmul.f32 %v737, %v581
    %v744 = vmul.f32 %v733, %v738
    %v745 = vadd.f32 %v743, %v744
    %v746 = vtanh.pop %v745
    %v747 = vmul.f32 %v742, %v746
    %748 = vmatprep.subr.mxu0 %v355
    %749 = vmatpush1.msra.mxu0 %v354
    %750 = vmatprep.subr.mxu0 %v359
    %751 = vmatpush1.msra.mxu0 %v358
    %752 = vmatprep.subr.mxu0 %v363
    %753 = vmatpush1.msra.mxu0 %v362
    %754 = vmatprep.subr.mxu0 %v367
    %755 = vmatpush1.msra.mxu0 %v366
    %756 = vmatprep.subr.mxu0 %v371
    %757 = vmatpush1.msra.mxu0 %v370
    %758 = vmatprep.subr.mxu0 %v375
    %759 = vmatpush1.msra.mxu0 %v374
    %760 = vmatprep.subr.mxu0 %v379
    %761 = vmatpush1.msra.mxu0 %v378
    %762 = vmatprep.subr.mxu0 %v383
    %763 = vmatpush1.msra.mxu0 %v382
    %764 = vmatprep.subr.mxu0 %v387
    %765 = vmatpush1.msra.mxu0 %v386
    %766 = vmatprep.subr.mxu0 %v391
    %767 = vmatpush1.msra.mxu0 %v390
    %768 = vmatprep.subr.mxu0 %v395
    %769 = vmatpush1.msra.mxu0 %v394
    %770 = vmatprep.subr.mxu0 %v399
    %771 = vmatpush1.msra.mxu0 %v398
    %772 = vmatprep.subr.mxu0 %v403
    %773 = vmatpush1.msra.mxu0 %v402
    %774 = vmatprep.subr.mxu0 %v407
    %775 = vmatpush1.msra.mxu0 %v406
    %776 = vmatprep.subr.mxu0 %v411
    %777 = vmatpush1.msra.mxu0 %v410
    %778 = vmatprep.subr.mxu0 %v415
    %779 = vmatpush1.msra.mxu0 %v414
    %780 = vmatprep.subr.mxu0 0.0
    %781 = vmatpush1.msra.mxu0 0.0
    %782 = vmatprep.subr.mxu0 0.0
    %783 = vmatpush1.msra.mxu0 0.0
    %784 = vmatprep.subr.mxu0 0.0
    %785 = vmatpush1.msra.mxu0 0.0
    %786 = vmatprep.subr.mxu0 0.0
    %787 = vmatpush1.msra.mxu0 0.0
    %788 = vmatprep.subr.mxu0 0.0
    %789 = vmatpush1.msra.mxu0 0.0
    %790 = vmatprep.subr.mxu0 0.0
    %791 = vmatpush1.msra.mxu0 0.0
    %792 = vmatprep.subr.mxu0 0.0
    %793 = vmatpush1.msra.mxu0 0.0
    %794 = vmatprep.subr.mxu0 0.0
    %795 = vmatpush1.msra.mxu0 0.0
    %796 = vmatprep.subr.mxu0 0.0
    %797 = vmatpush1.msra.mxu0 0.0
    %798 = vmatprep.subr.mxu0 0.0
    %799 = vmatpush1.msra.mxu0 0.0
    %800 = vmatprep.subr.mxu0 0.0
    %801 = vmatpush1.msra.mxu0 0.0
    %802 = vmatprep.subr.mxu0 0.0
    %803 = vmatpush1.msra.mxu0 0.0
    %804 = vmatprep.subr.mxu0 0.0
    %805 = vmatpush1.msra.mxu0 0.0
    %806 = vmatprep.subr.mxu0 0.0
    %807 = vmatpush1.msra.mxu0 0.0
    %808 = vmatprep.subr.mxu0 0.0
    %809 = vmatpush1.msra.mxu0 0.0
    %810 = vmatprep.subr.mxu0 0.0
    %811 = vmatpush1.msra.mxu0 0.0
    %812 = vmatprep.mubr.f32.mxu0 0.0
    %813 = vmatmul.mubr.f32.gmra.mrb[0].mxu0 %v747
    %v814 = vpop.f32.mrb[0].mxu0
    %v815 = vadd.f32 0.0, %v814
    %v816 = vpop.f32.mrb[0].mxu0
    %v817 = vadd.f32 0.0, %v816
    %818 = vdwg.mxu0
    %819 = vmatprep.subr.mxu0 %v357
    %820 = vmatpush1.msra.mxu0 %v356
    %821 = vmatprep.subr.mxu0 %v361
    %822 = vmatpush1.msra.mxu0 %v360
    %823 = vmatprep.subr.mxu0 %v365
    %824 = vmatpush1.msra.mxu0 %v364
    %825 = vmatprep.subr.mxu0 %v369
    %826 = vmatpush1.msra.mxu0 %v368
    %827 = vmatprep.subr.mxu0 %v373
    %828 = vmatpush1.msra.mxu0 %v372
    %829 = vmatprep.subr.mxu0 %v377
    %830 = vmatpush1.msra.mxu0 %v376
    %831 = vmatprep.subr.mxu0 %v381
    %832 = vmatpush1.msra.mxu0 %v380
    %833 = vmatprep.subr.mxu0 %v385
    %834 = vmatpush1.msra.mxu0 %v384
    %835 = vmatprep.subr.mxu0 %v389
    %836 = vmatpush1.msra.mxu0 %v388
    %837 = vmatprep.subr.mxu0 %v393
    %838 = vmatpush1.msra.mxu0 %v392
    %839 = vmatprep.subr.mxu0 %v397
    %840 = vmatpush1.msra.mxu0 %v396
    %841 = vmatprep.subr.mxu0 %v401
    %842 = vmatpush1.msra.mxu0 %v400
    %843 = vmatprep.subr.mxu0 %v405
    %844 = vmatpush1.msra.mxu0 %v404
    %845 = vmatprep.subr.mxu0 %v409
    %846 = vmatpush1.msra.mxu0 %v408
    %847 = vmatprep.subr.mxu0 %v413
    %848 = vmatpush1.msra.mxu0 %v412
    %849 = vmatprep.subr.mxu0 %v417
    %850 = vmatpush1.msra.mxu0 %v416
    %851 = vmatprep.subr.mxu0 0.0
    %852 = vmatpush1.msra.mxu0 0.0
    %853 = vmatprep.subr.mxu0 0.0
    %854 = vmatpush1.msra.mxu0 0.0
    %855 = vmatprep.subr.mxu0 0.0
    %856 = vmatpush1.msra.mxu0 0.0
    %857 = vmatprep.subr.mxu0 0.0
    %858 = vmatpush1.msra.mxu0 0.0
    %859 = vmatprep.subr.mxu0 0.0
    %860 = vmatpush1.msra.mxu0 0.0
    %861 = vmatprep.subr.mxu0 0.0
    %862 = vmatpush1.msra.mxu0 0.0
    %863 = vmatprep.subr.mxu0 0.0
    %864 = vmatpush1.msra.mxu0 0.0
    %865 = vmatprep.subr.mxu0 0.0
    %866 = vmatpush1.msra.mxu0 0.0
    %867 = vmatprep.subr.mxu0 0.0
    %868 = vmatpush1.msra.mxu0 0.0
    %869 = vmatprep.subr.mxu0 0.0
    %870 = vmatpush1.msra.mxu0 0.0
    %871 = vmatprep.subr.mxu0 0.0
    %872 = vmatpush1.msra.mxu0 0.0
    %873 = vmatprep.subr.mxu0 0.0
    %874 = vmatpush1.msra.mxu0 0.0
    %875 = vmatprep.subr.mxu0 0.0
    %876 = vmatpush1.msra.mxu0 0.0
    %877 = vmatprep.subr.mxu0 0.0
    %878 = vmatpush1.msra.mxu0 0.0
    %879 = vmatprep.subr.mxu0 0.0
    %880 = vmatpush1.msra.mxu0 0.0
    %881 = vmatprep.subr.mxu0 0.0
    %882 = vmatpush1.msra.mxu0 0.0
    %883 = vmatprep.mubr.f32.mxu0 0.0
    %884 = vmatmul.mubr.f32.gmra.mrb[0].mxu0 %v747
    %v885 = vpop.f32.mrb[0].mxu0
    %v886 = vadd.f32 0.0, %v885
    %v887 = vpop.f32.mrb[0].mxu0
    %v888 = vadd.f32 0.0, %v887
    %889 = vdwg.mxu0
    %v890 = vadd.f32 %v207, %v815
    %v891 = vadd.f32 %v209, %v817
    %v892 = vadd.f32 %v320, %v886
    %v893 = vadd.f32 %v322, %v888
    %v894 = vmul.f32 %v890, 0.5
    %v895 = vtanh.pop %v894
    %v896 = vmul.f32 %v895, 0.5
    %v897 = vadd.f32 %v896, 0.5
    %v898 = vmul.f32 %v891, 0.5
    %v899 = vtanh.pop %v898
    %v900 = vmul.f32 %v899, 0.5
    %v901 = vadd.f32 %v900, 0.5
    %v902 = vtanh.pop %v892
    %v903 = vmul.f32 %v893, 0.5
    %v904 = vtanh.pop %v903
    %v905 = vmul.f32 %v904, 0.5
    %v906 = vadd.f32 %v905, 0.5
    %v907 = vmul.f32 %v901, %v745
    %v908 = vmul.f32 %v897, %v902
    %v909 = vadd.f32 %v907, %v908
    %v910 = vtanh.pop %v909
    %v911 = vmul.f32 %v906, %v910
    %912 = vmatprep.subr.mxu0 %v355
    %913 = vmatpush1.msra.mxu0 %v354
    %914 = vmatprep.subr.mxu0 %v359
    %915 = vmatpush1.msra.mxu0 %v358
    %916 = vmatprep.subr.mxu0 %v363
    %917 = vmatpush1.msra.mxu0 %v362
    %918 = vmatprep.subr.mxu0 %v367
    %919 = vmatpush1.msra.mxu0 %v366
    %920 = vmatprep.subr.mxu0 %v371
    %921 = vmatpush1.msra.mxu0 %v370
    %922 = vmatprep.subr.mxu0 %v375
    %923 = vmatpush1.msra.mxu0 %v374
    %924 = vmatprep.subr.mxu0 %v379
    %925 = vmatpush1.msra.mxu0 %v378
    %926 = vmatprep.subr.mxu0 %v383
    %927 = vmatpush1.msra.mxu0 %v382
    %928 = vmatprep.subr.mxu0 %v387
    %929 = vmatpush1.msra.mxu0 %v386
    %930 = vmatprep.subr.mxu0 %v391
    %931 = vmatpush1.msra.mxu0 %v390
    %932 = vmatprep.subr.mxu0 %v395
    %933 = vmatpush1.msra.mxu0 %v394
    %934 = vmatprep.subr.mxu0 %v399
    %935 = vmatpush1.msra.mxu0 %v398
    %936 = vmatprep.subr.mxu0 %v403
    %937 = vmatpush1.msra.mxu0 %v402
    %938 = vmatprep.subr.mxu0 %v407
    %939 = vmatpush1.msra.mxu0 %v406
    %940 = vmatprep.subr.mxu0 %v411
    %941 = vmatpush1.msra.mxu0 %v410
    %942 = vmatprep.subr.mxu0 %v415
    %943 = vmatpush1.msra.mxu0 %v414
    %944 = vmatprep.subr.mxu0 0.0
    %945 = vmatpush1.msra.mxu0 0.0
    %946 = vmatprep.subr.mxu0 0.0
    %947 = vmatpush1.msra.mxu0 0.0
    %948 = vmatprep.subr.mxu0 0.0
    %949 = vmatpush1.msra.mxu0 0.0
    %950 = vmatprep.subr.mxu0 0.0
    %951 = vmatpush1.msra.mxu0 0.0
    %952 = vmatprep.subr.mxu0 0.0
    %953 = vmatpush1.msra.mxu0 0.0
    %954 = vmatprep.subr.mxu0 0.0
    %955 = vmatpush1.msra.mxu0 0.0
    %956 = vmatprep.subr.mxu0 0.0
    %957 = vmatpush1.msra.mxu0 0.0
    %958 = vmatprep.subr.mxu0 0.0
    %959 = vmatpush1.msra.mxu0 0.0
    %960 = vmatprep.subr.mxu0 0.0
    %961 = vmatpush1.msra.mxu0 0.0
    %962 = vmatprep.subr.mxu0 0.0
    %963 = vmatpush1.msra.mxu0 0.0
    %964 = vmatprep.subr.mxu0 0.0
    %965 = vmatpush1.msra.mxu0 0.0
    %966 = vmatprep.subr.mxu0 0.0
    %967 = vmatpush1.msra.mxu0 0.0
    %968 = vmatprep.subr.mxu0 0.0
    %969 = vmatpush1.msra.mxu0 0.0
    %970 = vmatprep.subr.mxu0 0.0
    %971 = vmatpush1.msra.mxu0 0.0
    %972 = vmatprep.subr.mxu0 0.0
    %973 = vmatpush1.msra.mxu0 0.0
    %974 = vmatprep.subr.mxu0 0.0
    %975 = vmatpush1.msra.mxu0 0.0
    %976 = vmatprep.mubr.f32.mxu0 0.0
    %977 = vmatmul.mubr.f32.gmra.mrb[0].mxu0 %v911
    %v978 = vpop.f32.mrb[0].mxu0
    %v979 = vadd.f32 0.0, %v978
    %v980 = vpop.f32.mrb[0].mxu0
    %v981 = vadd.f32 0.0, %v980
    %982 = vdwg.mxu0
    %983 = vmatprep.subr.mxu0 %v357
    %984 = vmatpush1.msra.mxu0 %v356
    %985 = vmatprep.subr.mxu0 %v361
    %986 = vmatpush1.msra.mxu0 %v360
    %987 = vmatprep.subr.mxu0 %v365
    %988 = vmatpush1.msra.mxu0 %v364
    %989 = vmatprep.subr.mxu0 %v369
    %990 = vmatpush1.msra.mxu0 %v368
    %991 = vmatprep.subr.mxu0 %v373
    %992 = vmatpush1.msra.mxu0 %v372
    %993 = vmatprep.subr.mxu0 %v377
    %994 = vmatpush1.msra.mxu0 %v376
    %995 = vmatprep.subr.mxu0 %v381
    %996 = vmatpush1.msra.mxu0 %v380
    %997 = vmatprep.subr.mxu0 %v385
    %998 = vmatpush1.msra.mxu0 %v384
    %999 = vmatprep.subr.mxu0 %v389
    %1000 = vmatpush1.msra.mxu0 %v388
    %1001 = vmatprep.subr.mxu0 %v393
    %1002 = vmatpush1.msra.mxu0 %v392
    %1003 = vmatprep.subr.mxu0 %v397
    %1004 = vmatpush1.msra.mxu0 %v396
    %1005 = vmatprep.subr.mxu0 %v401
    %1006 = vmatpush1.msra.mxu0 %v400
    %1007 = vmatprep.subr.mxu0 %v405
    %1008 = vmatpush1.msra.mxu0 %v404
    %1009 = vmatprep.subr.mxu0 %v409
    %1010 = vmatpush1.msra.mxu0 %v408
    %1011 = vmatprep.subr.mxu0 %v413
    %1012 = vmatpush1.msra.mxu0 %v412
    %1013 = vmatprep.subr.mxu0 %v417
    %1014 = vmatpush1.msra.mxu0 %v416
    %1015 = vmatprep.subr.mxu0 0.0
    %1016 = vmatpush1.msra.mxu0 0.0
    %1017 = vmatprep.subr.mxu0 0.0
    %1018 = vmatpush1.msra.mxu0 0.0
    %1019 = vmatprep.subr.mxu0 0.0
    %1020 = vmatpush1.msra.mxu0 0.0
    %1021 = vmatprep.subr.mxu0 0.0
    %1022 = vmatpush1.msra.mxu0 0.0
    %1023 = vmatprep.subr.mxu0 0.0
    %1024 = vmatpush1.msra.mxu0 0.0
    %1025 = vmatprep.subr.mxu0 0.0
    %1026 = vmatpush1.msra.mxu0 0.0
    %1027 = vmatprep.subr.mxu0 0.0
    %1028 = vmatpush1.msra.mxu0 0.0
    %1029 = vmatprep.subr.mxu0 0.0
    %1030 = vmatpush1.msra.mxu0 0.0
    %1031 = vmatprep.subr.mxu0 0.0
    %1032 = vmatpush1.msra.mxu0 0.0
    %1033 = vmatprep.subr.mxu0 0.0
    %1034 = vmatpush1.msra.mxu0 0.0
    %1035 = vmatprep.subr.mxu0 0.0
    %1036 = vmatpush1.msra.mxu0 0.0
    %1037 = vmatprep.subr.mxu0 0.0
    %1038 = vmatpush1.msra.mxu0 0.0
    %1039 = vmatprep.subr.mxu0 0.0
    %1040 = vmatpush1.msra.mxu0 0.0
    %1041 = vmatprep.subr.mxu0 0.0
    %1042 = vmatpush1.msra.mxu0 0.0
    %1043 = vmatprep.subr.mxu0 0.0
    %1044 = vmatpush1.msra.mxu0 0.0
    %1045 = vmatprep.subr.mxu0 0.0
    %1046 = vmatpush1.msra.mxu0 0.0
    %1047 = vmatprep.mubr.f32.mxu0 0.0
    %1048 = vmatmul.mubr.f32.gmra.mrb[0].mxu0 %v911
    %v1049 = vpop.f32.mrb[0].mxu0
    %v1050 = vadd.f32 0.0, %v1049
    %v1051 = vpop.f32.mrb[0].mxu0
    %v1052 = vadd.f32 0.0, %v1051
    %1053 = vdwg.mxu0
    %v1054 = vadd.f32 %v213, %v979
    %v1055 = vadd.f32 %v215, %v981
    %v1056 = vadd.f32 %v326, %v1050
    %v1057 = vadd.f32 %v328, %v1052
    %v1058 = vmul.f32 %v1054, 0.5
    %v1059 = vtanh.pop %v1058
    %v1060 = vmul.f32 %v1059, 0.5
    %v1061 = vadd.f32 %v1060, 0.5
    %v1062 = vmul.f32 %v1055, 0.5
    %v1063 = vtanh.pop %v1062
    %v1064 = vmul.f32 %v1063, 0.5
    %v1065 = vadd.f32 %v1064, 0.5
    %v1066 = vtanh.pop %v1056
    %v1067 = vmul.f32 %v1057, 0.5
    %v1068 = vtanh.pop %v1067
    %v1069 = vmul.f32 %v1068, 0.5
    %v1070 = vadd.f32 %v1069, 0.5
    %v1071 = vmul.f32 %v1065, %v909
    %v1072 = vmul.f32 %v1061, %v1066
    %v1073 = vadd.f32 %v1071, %v1072
    %v1074 = vtanh.pop %v1073
    %v1075 = vmul.f32 %v1070, %v1074
    %1076 = vmatprep.subr.mxu0 %v355
    %1077 = vmatpush1.msra.mxu0 %v354
    %1078 = vmatprep.subr.mxu0 %v359
    %1079 = vmatpush1.msra.mxu0 %v358
    %1080 = vmatprep.subr.mxu0 %v363
    %1081 = vmatpush1.msra.mxu0 %v362
    %1082 = vmatprep.subr.mxu0 %v367
    %1083 = vmatpush1.msra.mxu0 %v366
    %1084 = vmatprep.subr.mxu0 %v371
    %1085 = vmatpush1.msra.mxu0 %v370
    %1086 = vmatprep.subr.mxu0 %v375
    %1087 = vmatpush1.msra.mxu0 %v374
    %1088 = vmatprep.subr.mxu0 %v379
    %1089 = vmatpush1.msra.mxu0 %v378
    %1090 = vmatprep.subr.mxu0 %v383
    %1091 = vmatpush1.msra.mxu0 %v382
    %1092 = vmatprep.subr.mxu0 %v387
    %1093 = vmatpush1.msra.mxu0 %v386
    %1094 = vmatprep.subr.mxu0 %v391
    %1095 = vmatpush1.msra.mxu0 %v390
    %1096 = vmatprep.subr.mxu0 %v395
    %1097 = vmatpush1.msra.mxu0 %v394
    %1098 = vmatprep.subr.mxu0 %v399
    %1099 = vmatpush1.msra.mxu0 %v398
    %1100 = vmatprep.subr.mxu0 %v403
    %1101 = vmatpush1.msra.mxu0 %v402
    %1102 = vmatprep.subr.mxu0 %v407
    %1103 = vmatpush1.msra.mxu0 %v406
    %1104 = vmatprep.subr.mxu0 %v411
    %1105 = vmatpush1.msra.mxu0 %v410
    %1106 = vmatprep.subr.mxu0 %v415
    %1107 = vmatpush1.msra.mxu0 %v414
    %1108 = vmatprep.subr.mxu0 0.0
    %1109 = vmatpush1.msra.mxu0 0.0
    %1110 = vmatprep.subr.mxu0 0.0
    %1111 = vmatpush1.msra.mxu0 0.0
    %1112 = vmatprep.subr.mxu0 0.0
    %1113 = vmatpush1.msra.mxu0 0.0
    %1114 = vmatprep.subr.mxu0 0.0
    %1115 = vmatpush1.msra.mxu0 0.0
    %1116 = vmatprep.subr.mxu0 0.0
    %1117 = vmatpush1.msra.mxu0 0.0
    %1118 = vmatprep.subr.mxu0 0.0
    %1119 = vmatpush1.msra.mxu0 0.0
    %1120 = vmatprep.subr.mxu0 0.0
    %1121 = vmatpush1.msra.mxu0 0.0
    %1122 = vmatprep.subr.mxu0 0.0
    %1123 = vmatpush1.msra.mxu0 0.0
    %1124 = vmatprep.subr.mxu0 0.0
    %1125 = vmatpush1.msra.mxu0 0.0
    %1126 = vmatprep.subr.mxu0 0.0
    %1127 = vmatpush1.msra.mxu0 0.0
    %1128 = vmatprep.subr.mxu0 0.0
    %1129 = vmatpush1.msra.mxu0 0.0
    %1130 = vmatprep.subr.mxu0 0.0
    %1131 = vmatpush1.msra.mxu0 0.0
    %1132 = vmatprep.subr.mxu0 0.0
    %1133 = vmatpush1.msra.mxu0 0.0
    %1134 = vmatprep.subr.mxu0 0.0
    %1135 = vmatpush1.msra.mxu0 0.0
    %1136 = vmatprep.subr.mxu0 0.0
    %1137 = vmatpush1.msra.mxu0 0.0
    %1138 = vmatprep.subr.mxu0 0.0
    %1139 = vmatpush1.msra.mxu0 0.0
    %1140 = vmatprep.mubr.f32.mxu0 0.0
    %1141 = vmatmul.mubr.f32.gmra.mrb[0].mxu0 %v1075
    %v1142 = vpop.f32.mrb[0].mxu0
    %v1143 = vadd.f32 0.0, %v1142
    %v1144 = vpop.f32.mrb[0].mxu0
    %v1145 = vadd.f32 0.0, %v1144
    %1146 = vdwg.mxu0
    %1147 = vmatprep.subr.mxu0 %v357
    %1148 = vmatpush1.msra.mxu0 %v356
    %1149 = vmatprep.subr.mxu0 %v361
    %1150 = vmatpush1.msra.mxu0 %v360
    %1151 = vmatprep.subr.mxu0 %v365
    %1152 = vmatpush1.msra.mxu0 %v364
    %1153 = vmatprep.subr.mxu0 %v369
    %1154 = vmatpush1.msra.mxu0 %v368
    %1155 = vmatprep.subr.mxu0 %v373
    %1156 = vmatpush1.msra.mxu0 %v372
    %1157 = vmatprep.subr.mxu0 %v377
    %1158 = vmatpush1.msra.mxu0 %v376
    %1159 = vmatprep.subr.mxu0 %v381
    %1160 = vmatpush1.msra.mxu0 %v380
    %1161 = vmatprep.subr.mxu0 %v385
    %1162 = vmatpush1.msra.mxu0 %v384
    %1163 = vmatprep.subr.mxu0 %v389
    %1164 = vmatpush1.msra.mxu0 %v388
    %1165 = vmatprep.subr.mxu0 %v393
    %1166 = vmatpush1.msra.mxu0 %v392
    %1167 = vmatprep.subr.mxu0 %v397
    %1168 = vmatpush1.msra.mxu0 %v396
    %1169 = vmatprep.subr.mxu0 %v401
    %1170 = vmatpush1.msra.mxu0 %v400
    %1171 = vmatprep.subr.mxu0 %v405
    %1172 = vmatpush1.msra.mxu0 %v404
    %1173 = vmatprep.subr.mxu0 %v409
    %1174 = vmatpush1.msra.mxu0 %v408
    %1175 = vmatprep.subr.mxu0 %v413
    %1176 = vmatpush1.msra.mxu0 %v412
    %1177 = vmatprep.subr.mxu0 %v417
    %1178 = vmatpush1.msra.mxu0 %v416
    %1179 = vmatprep.subr.mxu0 0.0
    %1180 = vmatpush1.msra.mxu0 0.0
    %1181 = vmatprep.subr.mxu0 0.0
    %1182 = vmatpush1.msra.mxu0 0.0
    %1183 = vmatprep.subr.mxu0 0.0
    %1184 = vmatpush1.msra.mxu0 0.0
    %1185 = vmatprep.subr.mxu0 0.0
    %1186 = vmatpush1.msra.mxu0 0.0
    %1187 = vmatprep.subr.mxu0 0.0
    %1188 = vmatpush1.msra.mxu0 0.0
    %1189 = vmatprep.subr.mxu0 0.0
    %1190 = vmatpush1.msra.mxu0 0.0
    %1191 = vmatprep.subr.mxu0 0.0
    %1192 = vmatpush1.msra.mxu0 0.0
    %1193 = vmatprep.subr.mxu0 0.0
    %1194 = vmatpush1.msra.mxu0 0.0
    %1195 = vmatprep.subr.mxu0 0.0
    %1196 = vmatpush1.msra.mxu0 0.0
    %1197 = vmatprep.subr.mxu0 0.0
    %1198 = vmatpush1.msra.mxu0 0.0
    %1199 = vmatprep.subr.mxu0 0.0
    %1200 = vmatpush1.msra.mxu0 0.0
    %1201 = vmatprep.subr.mxu0 0.0
    %1202 = vmatpush1.msra.mxu0 0.0
    %1203 = vmatprep.subr.mxu0 0.0
    %1204 = vmatpush1.msra.mxu0 0.0
    %1205 = vmatprep.subr.mxu0 0.0
    %1206 = vmatpush1.msra.mxu0 0.0
    %1207 = vmatprep.subr.mxu0 0.0
    %1208 = vmatpush1.msra.mxu0 0.0
    %1209 = vmatprep.subr.mxu0 0.0
    %1210 = vmatpush1.msra.mxu0 0.0
    %1211 = vmatprep.mubr.f32.mxu0 0.0
    %1212 = vmatmul.mubr.f32.gmra.mrb[0].mxu0 %v1075
    %v1213 = vpop.f32.mrb[0].mxu0
    %v1214 = vadd.f32 0.0, %v1213
    %v1215 = vpop.f32.mrb[0].mxu0
    %v1216 = vadd.f32 0.0, %v1215
    %1217 = vdwg.mxu0
    %v1218 = vadd.f32 %v219, %v1143
    %v1219 = vadd.f32 %v221, %v1145
    %v1220 = vadd.f32 %v332, %v1214
    %v1221 = vadd.f32 %v334, %v1216
    %v1222 = vmul.f32 %v1218, 0.5
    %v1223 = vtanh.pop %v1222
    %v1224 = vmul.f32 %v1223, 0.5
    %v1225 = vadd.f32 %v1224, 0.5
    %v1226 = vmul.f32 %v1219, 0.5
    %v1227 = vtanh.pop %v1226
    %v1228 = vmul.f32 %v1227, 0.5
    %v1229 = vadd.f32 %v1228, 0.5
    %v1230 = vtanh.pop %v1220
    %v1231 = vmul.f32 %v1221, 0.5
    %v1232 = vtanh.pop %v1231
    %v1233 = vmul.f32 %v1232, 0.5
    %v1234 = vadd.f32 %v1233, 0.5
    %v1235 = vmul.f32 %v1229, %v1073
    %v1236 = vmul.f32 %v1225, %v1230
    %v1237 = vadd.f32 %v1235, %v1236
    %v1238 = vtanh.pop %v1237
    %v1239 = vmul.f32 %v1234, %v1238
    %1240 = vmatprep.subr.mxu0 %v355
    %1241 = vmatpush1.msra.mxu0 %v354
    %1242 = vmatprep.subr.mxu0 %v359
    %1243 = vmatpush1.msra.mxu0 %v358
    %1244 = vmatprep.subr.mxu0 %v363
    %1245 = vmatpush1.msra.mxu0 %v362
    %1246 = vmatprep.subr.mxu0 %v367
    %1247 = vmatpush1.msra.mxu0 %v366
    %1248 = vmatprep.subr.mxu0 %v371
    %1249 = vmatpush1.msra.mxu0 %v370
    %1250 = vmatprep.subr.mxu0 %v375
    %1251 = vmatpush1.msra.mxu0 %v374
    %1252 = vmatprep.subr.mxu0 %v379
    %1253 = vmatpush1.msra.mxu0 %v378
    %1254 = vmatprep.subr.mxu0 %v383
    %1255 = vmatpush1.msra.mxu0 %v382
    %1256 = vmatprep.subr.mxu0 %v387
    %1257 = vmatpush1.msra.mxu0 %v386
    %1258 = vmatprep.subr.mxu0 %v391
    %1259 = vmatpush1.msra.mxu0 %v390
    %1260 = vmatprep.subr.mxu0 %v395
    %1261 = vmatpush1.msra.mxu0 %v394
    %1262 = vmatprep.subr.mxu0 %v399
    %1263 = vmatpush1.msra.mxu0 %v398
    %1264 = vmatprep.subr.mxu0 %v403
    %1265 = vmatpush1.msra.mxu0 %v402
    %1266 = vmatprep.subr.mxu0 %v407
    %1267 = vmatpush1.msra.mxu0 %v406
    %1268 = vmatprep.subr.mxu0 %v411
    %1269 = vmatpush1.msra.mxu0 %v410
    %1270 = vmatprep.subr.mxu0 %v415
    %1271 = vmatpush1.msra.mxu0 %v414
    %1272 = vmatprep.subr.mxu0 0.0
    %1273 = vmatpush1.msra.mxu0 0.0
    %1274 = vmatprep.subr.mxu0 0.0
    %1275 = vmatpush1.msra.mxu0 0.0
    %1276 = vmatprep.subr.mxu0 0.0
    %1277 = vmatpush1.msra.mxu0 0.0
    %1278 = vmatprep.subr.mxu0 0.0
    %1279 = vmatpush1.msra.mxu0 0.0
    %1280 = vmatprep.subr.mxu0 0.0
    %1281 = vmatpush1.msra.mxu0 0.0
    %1282 = vmatprep.subr.mxu0 0.0
    %1283 = vmatpush1.msra.mxu0 0.0
    %1284 = vmatprep.subr.mxu0 0.0
    %1285 = vmatpush1.msra.mxu0 0.0
    %1286 = vmatprep.subr.mxu0 0.0
    %1287 = vmatpush1.msra.mxu0 0.0
    %1288 = vmatprep.subr.mxu0 0.0
    %1289 = vmatpush1.msra.mxu0 0.0
    %1290 = vmatprep.subr.mxu0 0.0
    %1291 = vmatpush1.msra.mxu0 0.0
    %1292 = vmatprep.subr.mxu0 0.0
    %1293 = vmatpush1.msra.mxu0 0.0
    %1294 = vmatprep.subr.mxu0 0.0
    %1295 = vmatpush1.msra.mxu0 0.0
    %1296 = vmatprep.subr.mxu0 0.0
    %1297 = vmatpush1.msra.mxu0 0.0
    %1298 = vmatprep.subr.mxu0 0.0
    %1299 = vmatpush1.msra.mxu0 0.0
    %1300 = vmatprep.subr.mxu0 0.0
    %1301 = vmatpush1.msra.mxu0 0.0
    %1302 = vmatprep.subr.mxu0 0.0
    %1303 = vmatpush1.msra.mxu0 0.0
    %1304 = vmatprep.mubr.f32.mxu0 0.0
    %1305 = vmatmul.mubr.f32.gmra.mrb[0].mxu0 %v1239
    %v1306 = vpop.f32.mrb[0].mxu0
    %v1307 = vadd.f32 0.0, %v1306
    %v1308 = vpop.f32.mrb[0].mxu0
    %v1309 = vadd.f32 0.0, %v1308
    %1310 = vdwg.mxu0
    %1311 = vmatprep.subr.mxu0 %v357
    %1312 = vmatpush1.msra.mxu0 %v356
    %1313 = vmatprep.subr.mxu0 %v361
    %1314 = vmatpush1.msra.mxu0 %v360
    %1315 = vmatprep.subr.mxu0 %v365
    %1316 = vmatpush1.msra.mxu0 %v364
    %1317 = vmatprep.subr.mxu0 %v369
    %1318 = vmatpush1.msra.mxu0 %v368
    %1319 = vmatprep.subr.mxu0 %v373
    %1320 = vmatpush1.msra.mxu0 %v372
    %1321 = vmatprep.subr.mxu0 %v377
    %1322 = vmatpush1.msra.mxu0 %v376
    %1323 = vmatprep.subr.mxu0 %v381
    %1324 = vmatpush1.msra.mxu0 %v380
    %1325 = vmatprep.subr.mxu0 %v385
    %1326 = vmatpush1.msra.mxu0 %v384
    %1327 = vmatprep.subr.mxu0 %v389
    %1328 = vmatpush1.msra.mxu0 %v388
    %1329 = vmatprep.subr.mxu0 %v393
    %1330 = vmatpush1.msra.mxu0 %v392
    %1331 = vmatprep.subr.mxu0 %v397
    %1332 = vmatpush1.msra.mxu0 %v396
    %1333 = vmatprep.subr.mxu0 %v401
    %1334 = vmatpush1.msra.mxu0 %v400
    %1335 = vmatprep.subr.mxu0 %v405
    %1336 = vmatpush1.msra.mxu0 %v404
    %1337 = vmatprep.subr.mxu0 %v409
    %1338 = vmatpush1.msra.mxu0 %v408
    %1339 = vmatprep.subr.mxu0 %v413
    %1340 = vmatpush1.msra.mxu0 %v412
    %1341 = vmatprep.subr.mxu0 %v417
    %1342 = vmatpush1.msra.mxu0 %v416
    %1343 = vmatprep.subr.mxu0 0.0
    %1344 = vmatpush1.msra.mxu0 0.0
    %1345 = vmatprep.subr.mxu0 0.0
    %1346 = vmatpush1.msra.mxu0 0.0
    %1347 = vmatprep.subr.mxu0 0.0
    %1348 = vmatpush1.msra.mxu0 0.0
    %1349 = vmatprep.subr.mxu0 0.0
    %1350 = vmatpush1.msra.mxu0 0.0
    %1351 = vmatprep.subr.mxu0 0.0
    %1352 = vmatpush1.msra.mxu0 0.0
    %1353 = vmatprep.subr.mxu0 0.0
    %1354 = vmatpush1.msra.mxu0 0.0
    %1355 = vmatprep.subr.mxu0 0.0
    %1356 = vmatpush1.msra.mxu0 0.0
    %1357 = vmatprep.subr.mxu0 0.0
    %1358 = vmatpush1.msra.mxu0 0.0
    %1359 = vmatprep.subr.mxu0 0.0
    %1360 = vmatpush1.msra.mxu0 0.0
    %1361 = vmatprep.subr.mxu0 0.0
    %1362 = vmatpush1.msra.mxu0 0.0
    %1363 = vmatprep.subr.mxu0 0.0
    %1364 = vmatpush1.msra.mxu0 0.0
    %1365 = vmatprep.subr.mxu0 0.0
    %1366 = vmatpush1.msra.mxu0 0.0
    %1367 = vmatprep.subr.mxu0 0.0
    %1368 = vmatpush1.msra.mxu0 0.0
    %1369 = vmatprep.subr.mxu0 0.0
    %1370 = vmatpush1.msra.mxu0 0.0
    %1371 = vmatprep.subr.mxu0 0.0
    %1372 = vmatpush1.msra.mxu0 0.0
    %1373 = vmatprep.subr.mxu0 0.0
    %1374 = vmatpush1.msra.mxu0 0.0
    %1375 = vmatprep.mubr.f32.mxu0 0.0
    %1376 = vmatmul.mubr.f32.gmra.mrb[0].mxu0 %v1239
    %v1377 = vpop.f32.mrb[0].mxu0
    %v1378 = vadd.f32 0.0, %v1377
    %v1379 = vpop.f32.mrb[0].mxu0
    %v1380 = vadd.f32 0.0, %v1379
    %1381 = vdwg.mxu0
    %v1382 = vadd.f32 %v225, %v1307
    %v1383 = vadd.f32 %v227, %v1309
    %v1384 = vadd.f32 %v338, %v1378
    %v1385 = vadd.f32 %v340, %v1380
    %v1386 = vmul.f32 %v1382, 0.5
    %v1387 = vtanh.pop %v1386
    %v1388 = vmul.f32 %v1387, 0.5
    %v1389 = vadd.f32 %v1388, 0.5
    %v1390 = vmul.f32 %v1383, 0.5
    %v1391 = vtanh.pop %v1390
    %v1392 = vmul.f32 %v1391, 0.5
    %v1393 = vadd.f32 %v1392, 0.5
    %v1394 = vtanh.pop %v1384
    %v1395 = vmul.f32 %v1385, 0.5
    %v1396 = vtanh.pop %v1395
    %v1397 = vmul.f32 %v1396, 0.5
    %v1398 = vadd.f32 %v1397, 0.5
    %v1399 = vmul.f32 %v1393, %v1237
    %v1400 = vmul.f32 %v1389, %v1394
    %v1401 = vadd.f32 %v1399, %v1400
    %v1402 = vtanh.pop %v1401
    %v1403 = vmul.f32 %v1398, %v1402
    %1404 = vmatprep.subr.mxu0 %v355
    %1405 = vmatpush1.msra.mxu0 %v354
    %1406 = vmatprep.subr.mxu0 %v359
    %1407 = vmatpush1.msra.mxu0 %v358
    %1408 = vmatprep.subr.mxu0 %v363
    %1409 = vmatpush1.msra.mxu0 %v362
    %1410 = vmatprep.subr.mxu0 %v367
    %1411 = vmatpush1.msra.mxu0 %v366
    %1412 = vmatprep.subr.mxu0 %v371
    %1413 = vmatpush1.msra.mxu0 %v370
    %1414 = vmatprep.subr.mxu0 %v375
    %1415 = vmatpush1.msra.mxu0 %v374
    %1416 = vmatprep.subr.mxu0 %v379
    %1417 = vmatpush1.msra.mxu0 %v378
    %1418 = vmatprep.subr.mxu0 %v383
    %1419 = vmatpush1.msra.mxu0 %v382
    %1420 = vmatprep.subr.mxu0 %v387
    %1421 = vmatpush1.msra.mxu0 %v386
    %1422 = vmatprep.subr.mxu0 %v391
    %1423 = vmatpush1.msra.mxu0 %v390
    %1424 = vmatprep.subr.mxu0 %v395
    %1425 = vmatpush1.msra.mxu0 %v394
    %1426 = vmatprep.subr.mxu0 %v399
    %1427 = vmatpush1.msra.mxu0 %v398
    %1428 = vmatprep.subr.mxu0 %v403
    %1429 = vmatpush1.msra.mxu0 %v402
    %1430 = vmatprep.subr.mxu0 %v407
    %1431 = vmatpush1.msra.mxu0 %v406
    %1432 = vmatprep.subr.mxu0 %v411
    %1433 = vmatpush1.msra.mxu0 %v410
    %1434 = vmatprep.subr.mxu0 %v415
    %1435 = vmatpush1.msra.mxu0 %v414
    %1436 = vmatprep.subr.mxu0 0.0
    %1437 = vmatpush1.msra.mxu0 0.0
    %1438 = vmatprep.subr.mxu0 0.0
    %1439 = vmatpush1.msra.mxu0 0.0
    %1440 = vmatprep.subr.mxu0 0.0
    %1441 = vmatpush1.msra.mxu0 0.0
    %1442 = vmatprep.subr.mxu0 0.0
    %1443 = vmatpush1.msra.mxu0 0.0
    %1444 = vmatprep.subr.mxu0 0.0
    %1445 = vmatpush1.msra.mxu0 0.0
    %1446 = vmatprep.subr.mxu0 0.0
    %1447 = vmatpush1.msra.mxu0 0.0
    %1448 = vmatprep.subr.mxu0 0.0
    %1449 = vmatpush1.msra.mxu0 0.0
    %1450 = vmatprep.subr.mxu0 0.0
    %1451 = vmatpush1.msra.mxu0 0.0
    %1452 = vmatprep.subr.mxu0 0.0
    %1453 = vmatpush1.msra.mxu0 0.0
    %1454 = vmatprep.subr.mxu0 0.0
    %1455 = vmatpush1.msra.mxu0 0.0
    %1456 = vmatprep.subr.mxu0 0.0
    %1457 = vmatpush1.msra.mxu0 0.0
    %1458 = vmatprep.subr.mxu0 0.0
    %1459 = vmatpush1.msra.mxu0 0.0
    %1460 = vmatprep.subr.mxu0 0.0
    %1461 = vmatpush1.msra.mxu0 0.0
    %1462 = vmatprep.subr.mxu0 0.0
    %1463 = vmatpush1.msra.mxu0 0.0
    %1464 = vmatprep.subr.mxu0 0.0
    %1465 = vmatpush1.msra.mxu0 0.0
    %1466 = vmatprep.subr.mxu0 0.0
    %1467 = vmatpush1.msra.mxu0 0.0
    %1468 = vmatprep.mubr.f32.mxu0 0.0
    %1469 = vmatmul.mubr.f32.gmra.mrb[0].mxu0 %v1403
    %v1470 = vpop.f32.mrb[0].mxu0
    %v1471 = vadd.f32 0.0, %v1470
    %v1472 = vpop.f32.mrb[0].mxu0
    %v1473 = vadd.f32 0.0, %v1472
    %1474 = vdwg.mxu0
    %1475 = vmatprep.subr.mxu0 %v357
    %1476 = vmatpush1.msra.mxu0 %v356
    %1477 = vmatprep.subr.mxu0 %v361
    %1478 = vmatpush1.msra.mxu0 %v360
    %1479 = vmatprep.subr.mxu0 %v365
    %1480 = vmatpush1.msra.mxu0 %v364
    %1481 = vmatprep.subr.mxu0 %v369
    %1482 = vmatpush1.msra.mxu0 %v368
    %1483 = vmatprep.subr.mxu0 %v373
    %1484 = vmatpush1.msra.mxu0 %v372
    %1485 = vmatprep.subr.mxu0 %v377
    %1486 = vmatpush1.msra.mxu0 %v376
    %1487 = vmatprep.subr.mxu0 %v381
    %1488 = vmatpush1.msra.mxu0 %v380
    %1489 = vmatprep.subr.mxu0 %v385
    %1490 = vmatpush1.msra.mxu0 %v384
    %1491 = vmatprep.subr.mxu0 %v389
    %1492 = vmatpush1.msra.mxu0 %v388
    %1493 = vmatprep.subr.mxu0 %v393
    %1494 = vmatpush1.msra.mxu0 %v392
    %1495 = vmatprep.subr.mxu0 %v397
    %1496 = vmatpush1.msra.mxu0 %v396
    %1497 = vmatprep.subr.mxu0 %v401
    %1498 = vmatpush1.msra.mxu0 %v400
    %1499 = vmatprep.subr.mxu0 %v405
    %1500 = vmatpush1.msra.mxu0 %v404
    %1501 = vmatprep.subr.mxu0 %v409
    %1502 = vmatpush1.msra.mxu0 %v408
    %1503 = vmatprep.subr.mxu0 %v413
    %1504 = vmatpush1.msra.mxu0 %v412
    %1505 = vmatprep.subr.mxu0 %v417
    %1506 = vmatpush1.msra.mxu0 %v416
    %1507 = vmatprep.subr.mxu0 0.0
    %1508 = vmatpush1.msra.mxu0 0.0
    %1509 = vmatprep.subr.mxu0 0.0
    %1510 = vmatpush1.msra.mxu0 0.0
    %1511 = vmatprep.subr.mxu0 0.0
    %1512 = vmatpush1.msra.mxu0 0.0
    %1513 = vmatprep.subr.mxu0 0.0
    %1514 = vmatpush1.msra.mxu0 0.0
    %1515 = vmatprep.subr.mxu0 0.0
    %1516 = vmatpush1.msra.mxu0 0.0
    %1517 = vmatprep.subr.mxu0 0.0
    %1518 = vmatpush1.msra.mxu0 0.0
    %1519 = vmatprep.subr.mxu0 0.0
    %1520 = vmatpush1.msra.mxu0 0.0
    %1521 = vmatprep.subr.mxu0 0.0
    %1522 = vmatpush1.msra.mxu0 0.0
    %1523 = vmatprep.subr.mxu0 0.0
    %1524 = vmatpush1.msra.mxu0 0.0
    %1525 = vmatprep.subr.mxu0 0.0
    %1526 = vmatpush1.msra.mxu0 0.0
    %1527 = vmatprep.subr.mxu0 0.0
    %1528 = vmatpush1.msra.mxu0 0.0
    %1529 = vmatprep.subr.mxu0 0.0
    %1530 = vmatpush1.msra.mxu0 0.0
    %1531 = vmatprep.subr.mxu0 0.0
    %1532 = vmatpush1.msra.mxu0 0.0
    %1533 = vmatprep.subr.mxu0 0.0
    %1534 = vmatpush1.msra.mxu0 0.0
    %1535 = vmatprep.subr.mxu0 0.0
    %1536 = vmatpush1.msra.mxu0 0.0
    %1537 = vmatprep.subr.mxu0 0.0
    %1538 = vmatpush1.msra.mxu0 0.0
    %1539 = vmatprep.mubr.f32.mxu0 0.0
    %1540 = vmatmul.mubr.f32.gmra.mrb[0].mxu0 %v1403
    %v1541 = vpop.f32.mrb[0].mxu0
    %v1542 = vadd.f32 0.0, %v1541
    %v1543 = vpop.f32.mrb[0].mxu0
    %v1544 = vadd.f32 0.0, %v1543
    %1545 = vdwg.mxu0
    %v1546 = vadd.f32 %v231, %v1471
    %v1547 = vadd.f32 %v233, %v1473
    %v1548 = vadd.f32 %v344, %v1542
    %v1549 = vadd.f32 %v346, %v1544
    %v1550 = vmul.f32 %v1546, 0.5
    %v1551 = vtanh.pop %v1550
    %v1552 = vmul.f32 %v1551, 0.5
    %v1553 = vadd.f32 %v1552, 0.5
    %v1554 = vmul.f32 %v1547, 0.5
    %v1555 = vtanh.pop %v1554
    %v1556 = vmul.f32 %v1555, 0.5
    %v1557 = vadd.f32 %v1556, 0.5
    %v1558 = vtanh.pop %v1548
    %v1559 = vmul.f32 %v1549, 0.5
    %v1560 = vtanh.pop %v1559
    %v1561 = vmul.f32 %v1560, 0.5
    %v1562 = vadd.f32 %v1561, 0.5
    %v1563 = vmul.f32 %v1557, %v1401
    %v1564 = vmul.f32 %v1553, %v1558
    %v1565 = vadd.f32 %v1563, %v1564
    %v1566 = vtanh.pop %v1565
    %v1567 = vmul.f32 %v1562, %v1566
    %1568 = vmatprep.subr.mxu0 %v355
    %1569 = vmatpush1.msra.mxu0 %v354
    %1570 = vmatprep.subr.mxu0 %v359
    %1571 = vmatpush1.msra.mxu0 %v358
    %1572 = vmatprep.subr.mxu0 %v363
    %1573 = vmatpush1.msra.mxu0 %v362
    %1574 = vmatprep.subr.mxu0 %v367
    %1575 = vmatpush1.msra.mxu0 %v366
    %1576 = vmatprep.subr.mxu0 %v371
    %1577 = vmatpush1.msra.mxu0 %v370
    %1578 = vmatprep.subr.mxu0 %v375
    %1579 = vmatpush1.msra.mxu0 %v374
    %1580 = vmatprep.subr.mxu0 %v379
    %1581 = vmatpush1.msra.mxu0 %v378
    %1582 = vmatprep.subr.mxu0 %v383
    %1583 = vmatpush1.msra.mxu0 %v382
    %1584 = vmatprep.subr.mxu0 %v387
    %1585 = vmatpush1.msra.mxu0 %v386
    %1586 = vmatprep.subr.mxu0 %v391
    %1587 = vmatpush1.msra.mxu0 %v390
    %1588 = vmatprep.subr.mxu0 %v395
    %1589 = vmatpush1.msra.mxu0 %v394
    %1590 = vmatprep.subr.mxu0 %v399
    %1591 = vmatpush1.msra.mxu0 %v398
    %1592 = vmatprep.subr.mxu0 %v403
    %1593 = vmatpush1.msra.mxu0 %v402
    %1594 = vmatprep.subr.mxu0 %v407
    %1595 = vmatpush1.msra.mxu0 %v406
    %1596 = vmatprep.subr.mxu0 %v411
    %1597 = vmatpush1.msra.mxu0 %v410
    %1598 = vmatprep.subr.mxu0 %v415
    %1599 = vmatpush1.msra.mxu0 %v414
    %1600 = vmatprep.subr.mxu0 0.0
    %1601 = vmatpush1.msra.mxu0 0.0
    %1602 = vmatprep.subr.mxu0 0.0
    %1603 = vmatpush1.msra.mxu0 0.0
    %1604 = vmatprep.subr.mxu0 0.0
    %1605 = vmatpush1.msra.mxu0 0.0
    %1606 = vmatprep.subr.mxu0 0.0
    %1607 = vmatpush1.msra.mxu0 0.0
    %1608 = vmatprep.subr.mxu0 0.0
    %1609 = vmatpush1.msra.mxu0 0.0
    %1610 = vmatprep.subr.mxu0 0.0
    %1611 = vmatpush1.msra.mxu0 0.0
    %1612 = vmatprep.subr.mxu0 0.0
    %1613 = vmatpush1.msra.mxu0 0.0
    %1614 = vmatprep.subr.mxu0 0.0
    %1615 = vmatpush1.msra.mxu0 0.0
    %1616 = vmatprep.subr.mxu0 0.0
    %1617 = vmatpush1.msra.mxu0 0.0
    %1618 = vmatprep.subr.mxu0 0.0
    %1619 = vmatpush1.msra.mxu0 0.0
    %1620 = vmatprep.subr.mxu0 0.0
    %1621 = vmatpush1.msra.mxu0 0.0
    %1622 = vmatprep.subr.mxu0 0.0
    %1623 = vmatpush1.msra.mxu0 0.0
    %1624 = vmatprep.subr.mxu0 0.0
    %1625 = vmatpush1.msra.mxu0 0.0
    %1626 = vmatprep.subr.mxu0 0.0
    %1627 = vmatpush1.msra.mxu0 0.0
    %1628 = vmatprep.subr.mxu0 0.0
    %1629 = vmatpush1.msra.mxu0 0.0
    %1630 = vmatprep.subr.mxu0 0.0
    %1631 = vmatpush1.msra.mxu0 0.0
    %1632 = vmatprep.mubr.f32.mxu0 0.0
    %1633 = vmatmul.mubr.f32.gmra.mrb[0].mxu0 %v1567
    %v1634 = vpop.f32.mrb[0].mxu0
    %v1635 = vadd.f32 0.0, %v1634
    %v1636 = vpop.f32.mrb[0].mxu0
    %v1637 = vadd.f32 0.0, %v1636
    %1638 = vdwg.mxu0
    %1639 = vmatprep.subr.mxu0 %v357
    %1640 = vmatpush1.msra.mxu0 %v356
    %1641 = vmatprep.subr.mxu0 %v361
    %1642 = vmatpush1.msra.mxu0 %v360
    %1643 = vmatprep.subr.mxu0 %v365
    %1644 = vmatpush1.msra.mxu0 %v364
    %1645 = vmatprep.subr.mxu0 %v369
    %1646 = vmatpush1.msra.mxu0 %v368
    %1647 = vmatprep.subr.mxu0 %v373
    %1648 = vmatpush1.msra.mxu0 %v372
    %1649 = vmatprep.subr.mxu0 %v377
    %1650 = vmatpush1.msra.mxu0 %v376
    %1651 = vmatprep.subr.mxu0 %v381
    %1652 = vmatpush1.msra.mxu0 %v380
    %1653 = vmatprep.subr.mxu0 %v385
    %1654 = vmatpush1.msra.mxu0 %v384
    %1655 = vmatprep.subr.mxu0 %v389
    %1656 = vmatpush1.msra.mxu0 %v388
    %1657 = vmatprep.subr.mxu0 %v393
    %1658 = vmatpush1.msra.mxu0 %v392
    %1659 = vmatprep.subr.mxu0 %v397
    %1660 = vmatpush1.msra.mxu0 %v396
    %1661 = vmatprep.subr.mxu0 %v401
    %1662 = vmatpush1.msra.mxu0 %v400
    %1663 = vmatprep.subr.mxu0 %v405
    %1664 = vmatpush1.msra.mxu0 %v404
    %1665 = vmatprep.subr.mxu0 %v409
    %1666 = vmatpush1.msra.mxu0 %v408
    %1667 = vmatprep.subr.mxu0 %v413
    %1668 = vmatpush1.msra.mxu0 %v412
    %1669 = vmatprep.subr.mxu0 %v417
    %1670 = vmatpush1.msra.mxu0 %v416
    %1671 = vmatprep.subr.mxu0 0.0
    %1672 = vmatpush1.msra.mxu0 0.0
    %1673 = vmatprep.subr.mxu0 0.0
    %1674 = vmatpush1.msra.mxu0 0.0
    %1675 = vmatprep.subr.mxu0 0.0
    %1676 = vmatpush1.msra.mxu0 0.0
    %1677 = vmatprep.subr.mxu0 0.0
    %1678 = vmatpush1.msra.mxu0 0.0
    %1679 = vmatprep.subr.mxu0 0.0
    %1680 = vmatpush1.msra.mxu0 0.0
    %1681 = vmatprep.subr.mxu0 0.0
    %1682 = vmatpush1.msra.mxu0 0.0
    %1683 = vmatprep.subr.mxu0 0.0
    %1684 = vmatpush1.msra.mxu0 0.0
    %1685 = vmatprep.subr.mxu0 0.0
    %1686 = vmatpush1.msra.mxu0 0.0
    %1687 = vmatprep.subr.mxu0 0.0
    %1688 = vmatpush1.msra.mxu0 0.0
    %1689 = vmatprep.subr.mxu0 0.0
    %1690 = vmatpush1.msra.mxu0 0.0
    %1691 = vmatprep.subr.mxu0 0.0
    %1692 = vmatpush1.msra.mxu0 0.0
    %1693 = vmatprep.subr.mxu0 0.0
    %1694 = vmatpush1.msra.mxu0 0.0
    %1695 = vmatprep.subr.mxu0 0.0
    %1696 = vmatpush1.msra.mxu0 0.0
    %1697 = vmatprep.subr.mxu0 0.0
    %1698 = vmatpush1.msra.mxu0 0.0
    %1699 = vmatprep.subr.mxu0 0.0
    %1700 = vmatpush1.msra.mxu0 0.0
    %1701 = vmatprep.subr.mxu0 0.0
    %1702 = vmatpush1.msra.mxu0 0.0
    %1703 = vmatprep.mubr.f32.mxu0 0.0
    %1704 = vmatmul.mubr.f32.gmra.mrb[0].mxu0 %v1567
    %v1705 = vpop.f32.mrb[0].mxu0
    %v1706 = vadd.f32 0.0, %v1705
    %v1707 = vpop.f32.mrb[0].mxu0
    %v1708 = vadd.f32 0.0, %v1707
    %1709 = vdwg.mxu0
    %v1710 = vadd.f32 %v237, %v1635
    %v1711 = vadd.f32 %v239, %v1637
    %v1712 = vadd.f32 %v350, %v1706
    %v1713 = vadd.f32 %v352, %v1708
    %v1714 = vmul.f32 %v1710, 0.5
    %v1715 = vtanh.pop %v1714
    %v1716 = vmul.f32 %v1715, 0.5
    %v1717 = vadd.f32 %v1716, 0.5
    %v1718 = vmul.f32 %v1711, 0.5
    %v1719 = vtanh.pop %v1718
    %v1720 = vmul.f32 %v1719, 0.5
    %v1721 = vadd.f32 %v1720, 0.5
    %v1722 = vtanh.pop %v1712
    %v1723 = vmul.f32 %v1713, 0.5
    %v1724 = vtanh.pop %v1723
    %v1725 = vmul.f32 %v1724, 0.5
    %v1726 = vadd.f32 %v1725, 0.5
    %v1727 = vmul.f32 %v1721, %v1565
    %v1728 = vmul.f32 %v1717, %v1722
    %v1729 = vadd.f32 %v1727, %v1728
    %v1730 = vtanh.pop %v1729
    %v1731 = vmul.f32 %v1726, %v1730
    %v1732 = vld [vmem:[#allocation5] sm:$0xff]
    %v1733 = vld [vmem:[#allocation5 + $0x8] sm:$0xff]
    %v1734 = vld [vmem:[#allocation5 + $0x10] sm:$0xff]
    %v1735 = vld [vmem:[#allocation5 + $0x18] sm:$0xff]
    %v1736 = vld [vmem:[#allocation5 + $0x20] sm:$0xff]
    %v1737 = vld [vmem:[#allocation5 + $0x28] sm:$0xff]
    %v1738 = vld [vmem:[#allocation5 + $0x30] sm:$0xff]
    %v1739 = vld [vmem:[#allocation5 + $0x38] sm:$0xff]
    %v1740 = vld [vmem:[#allocation5 + $0x40] sm:$0xff]
    %v1741 = vld [vmem:[#allocation5 + $0x48] sm:$0xff]
    %v1742 = vld [vmem:[#allocation5 + $0x50] sm:$0xff]
    %v1743 = vld [vmem:[#allocation5 + $0x58] sm:$0xff]
    %v1744 = vld [vmem:[#allocation5 + $0x60] sm:$0xff]
    %v1745 = vld [vmem:[#allocation5 + $0x68] sm:$0xff]
    %v1746 = vld [vmem:[#allocation5 + $0x70] sm:$0xff]
    %v1747 = vld [vmem:[#allocation5 + $0x78] sm:$0xff]
    %v1748 = vld [vmem:[%s7] sm:$0x1]
    %v1750 = vlaneseq
    %v1751 = vshrl.u32 %v1750, 7
    %v1752 = vsub.s32 0, %v1751
    %v1753 = vrot.slane %v1748, %v1752
    %1755 = vmatprep.subr.mxu0 0.0
    %1756 = vmatpush1.msra.mxu0 %v1732
    %1757 = vmatprep.subr.mxu0 0.0
    %1758 = vmatpush1.msra.mxu0 %v1733
    %1759 = vmatprep.subr.mxu0 0.0
    %1760 = vmatpush1.msra.mxu0 %v1734
    %1761 = vmatprep.subr.mxu0 0.0
    %1762 = vmatpush1.msra.mxu0 %v1735
    %1763 = vmatprep.subr.mxu0 0.0
    %1764 = vmatpush1.msra.mxu0 %v1736
    %1765 = vmatprep.subr.mxu0 0.0
    %1766 = vmatpush1.msra.mxu0 %v1737
    %1767 = vmatprep.subr.mxu0 0.0
    %1768 = vmatpush1.msra.mxu0 %v1738
    %1769 = vmatprep.subr.mxu0 0.0
    %1770 = vmatpush1.msra.mxu0 %v1739
    %1771 = vmatprep.subr.mxu0 0.0
    %1772 = vmatpush1.msra.mxu0 %v1740
    %1773 = vmatprep.subr.mxu0 0.0
    %1774 = vmatpush1.msra.mxu0 %v1741
    %1775 = vmatprep.subr.mxu0 0.0
    %1776 = vmatpush1.msra.mxu0 %v1742
    %1777 = vmatprep.subr.mxu0 0.0
    %1778 = vmatpush1.msra.mxu0 %v1743
    %1779 = vmatprep.subr.mxu0 0.0
    %1780 = vmatpush1.msra.mxu0 %v1744
    %1781 = vmatprep.subr.mxu0 0.0
    %1782 = vmatpush1.msra.mxu0 %v1745
    %1783 = vmatprep.subr.mxu0 0.0
    %1784 = vmatpush1.msra.mxu0 %v1746
    %1785 = vmatprep.subr.mxu0 0.0
    %1786 = vmatpush1.msra.mxu0 %v1747
    %1787 = vmatprep.subr.mxu0 0.0
    %1788 = vmatpush1.msra.mxu0 0.0
    %1789 = vmatprep.subr.mxu0 0.0
    %1790 = vmatpush1.msra.mxu0 0.0
    %1791 = vmatprep.subr.mxu0 0.0
    %1792 = vmatpush1.msra.mxu0 0.0
    %1793 = vmatprep.subr.mxu0 0.0
    %1794 = vmatpush1.msra.mxu0 0.0
    %1795 = vmatprep.subr.mxu0 0.0
    %1796 = vmatpush1.msra.mxu0 0.0
    %1797 = vmatprep.subr.mxu0 0.0
    %1798 = vmatpush1.msra.mxu0 0.0
    %1799 = vmatprep.subr.mxu0 0.0
    %1800 = vmatpush1.msra.mxu0 0.0
    %1801 = vmatprep.subr.mxu0 0.0
    %1802 = vmatpush1.msra.mxu0 0.0
    %1803 = vmatprep.subr.mxu0 0.0
    %1804 = vmatpush1.msra.mxu0 0.0
    %1805 = vmatprep.subr.mxu0 0.0
    %1806 = vmatpush1.msra.mxu0 0.0
    %1807 = vmatprep.subr.mxu0 0.0
    %1808 = vmatpush1.msra.mxu0 0.0
    %1809 = vmatprep.subr.mxu0 0.0
    %1810 = vmatpush1.msra.mxu0 0.0
    %1811 = vmatprep.subr.mxu0 0.0
    %1812 = vmatpush1.msra.mxu0 0.0
    %1813 = vmatprep.subr.mxu0 0.0
    %1814 = vmatpush1.msra.mxu0 0.0
    %1815 = vmatprep.subr.mxu0 0.0
    %1816 = vmatpush1.msra.mxu0 0.0
    %1817 = vmatprep.subr.mxu0 0.0
    %1818 = vmatpush1.msra.mxu0 0.0
    %1819 = vmatprep.mubr.f32.mxu0 0.0
    %1820 = vmatmul.mubr.f32.gmra.mrb[0].mxu0 %v1731
    %v1821 = vpop.f32.mrb[0].mxu0
    %v1822 = vadd.f32 %v1753, %v1821
    %v1823 = vpop.f32.mrb[0].mxu0
    %1824 = vdwg.mxu0
    %v1825 = vmul.f32 %v1822, 0.5
    %v1826 = vtanh.pop %v1825
    %v1827 = vmul.f32 %v1826, 0.5
    %v1828 = vadd.f32 %v1827, 0.5
    %1829 = vst [vmem:[#allocation7] sm:$0xff] %v1828
    // Predicated region
    $region42: #{tpu_custom_call.1} parent=1 // pred_check
      _
    $region43: #{tpu_custom_call.1} parent=1 // pred_check_branch
      %1831 = sbr.rel (0) target = $region45
    $region44: #{tpu_custom_call.1} parent=1 // pred_region
      %s1833 = ssub.s32 128, 128
      %1834 = vsyncadd [#allocation4], %s1833
      %s1836 = sshll.u32 [#allocation7], 4
      %s1837 = int_to_ptr.vmem [resolvable:$true] %s1836
      %1839 = dma.vmem_to_hbm [thread:$0]  %s1837, 128, %s8, [#allocation4]
    $region45: #{tpu_custom_call.1} parent=1 // pred_fallthru
      _
    // Predicated region
    $region46: #{tpu_custom_call.1} parent=1 // pred_check
      _
    $region47: #{tpu_custom_call.1} parent=1 // pred_check_branch
      %1841 = sbr.rel (0) target = $region49
    $region48: #{tpu_custom_call.1} parent=1 // pred_region
      %1842 = dma.done [#allocation4], 128
    $region49: #{tpu_custom_call.1} parent=1 // pred_fallthru
      _
    %1843 = vsyncpa [#allocation3], 1
    %1844 = vsyncpa [#allocation6], 1
    %1845 = vsyncpa [#allocation4], 1

</llo_original>
